<compile_context>
chip_gen: v6e
topology: v6e:2x2x1
jax: 0.10.0
libtpu: 0.0.40
codegen_flags: <defaults>
</compile_context>

<pallas_src>
import functools

import jax
import jax.numpy as jnp
from jax.experimental import pallas as pl
from jax.experimental.pallas import tpu as pltpu


def _round_up(x, m):
    return -(-x // m) * m


def _mix_softmax_kernel(x_ref, w_ref, b_ref, wd_ref, bd_ref, o_ref, *,
                        n_components, ninp, prior_pad):
    """One token tile.

    x_ref : (TT, H)            matmul dtype
    w_ref : (H, Kp + K*E)      fused [prior | latent] weights, matmul dtype
    b_ref : (1, Kp + K*E)      fused bias, f32 (-1e30 on padded prior lanes)
    wd_ref: (E, Cp)            decoder weights, matmul dtype (zero-padded cols)
    bd_ref: (1, Cp)            decoder bias, f32 (-1e30 on padded classes)
    o_ref : (TT, Cp)
    """
    K, E, kp = n_components, ninp, prior_pad

    # --- single fused matmul: prior logits + latent pre-activations --------
    h = jnp.dot(x_ref[...], w_ref[...],
                preferred_element_type=jnp.float32) + b_ref[...]

    # --- prior softmax (exact normalization; padded lanes give exp() == 0) -
    p = h[:, :kp]
    p = jnp.exp(p - jnp.max(p, axis=-1, keepdims=True))
    priors = p / jnp.sum(p, axis=-1, keepdims=True)           # (TT, Kp) f32

    # --- latent activations (f32 tanh), one cast for the decode matmuls ----
    lat = jnp.tanh(h[:, kp:]).astype(wd_ref.dtype)             # (TT, K*E)

    # --- streamed decode: per component matmul + softmax + mixture ---------
    acc = None
    for k in range(K):                                         # static unroll
        d = jnp.dot(lat[:, k * E:(k + 1) * E], wd_ref[...],
                    preferred_element_type=jnp.float32) + bd_ref[...]
        e = jnp.exp(d - jnp.max(d, axis=-1, keepdims=True))
        # fold the softmax normalization into the (TT, 1) prior scale
        scale = priors[:, k:k + 1] / jnp.sum(e, axis=-1, keepdims=True)
        term = scale * e
        acc = term if acc is None else acc + term
    o_ref[...] = acc.astype(o_ref.dtype)


def mix_softmax(context, params, *, n_components, ninp, n_classes,
                token_tile=512, matmul_dtype=jnp.bfloat16):
    """context: [B, S, nlasthid] (or [B, A, S, nlasthid]); returns [..., n_classes]."""
    lead_shape = context.shape[:-1]
    H = context.shape[-1]
    K, E = n_components, ninp
    out_dtype = context.dtype

    # Cast x to the matmul dtype host-side: halves DMA bytes + VMEM for x.
    x = context.reshape(-1, H).astype(matmul_dtype)            # (N, H)
    n_tokens = x.shape[0]

    # Lane-dense output; 256 alignment for the 256-wide MXUs when it is cheap.
    c_pad = _round_up(n_classes, 256 if n_classes > 128 else 128)
    kp = max(128, _round_up(K, 128))                           # prior lane pad
    fused_n = kp + K * E
    mm_bytes = jnp.dtype(matmul_dtype).itemsize
    out_bytes = jnp.dtype(out_dtype).itemsize

    # ---- token tile selection ---------------------------------------------
    tt = int(token_tile)
    if n_tokens < tt:
        tt = max(8, _round_up(n_tokens, 8))
    # v7x megacore: make sure the "parallel" token axis has >= 2 grid steps.
    if n_tokens >= 16 and -(-n_tokens // tt) < 2:
        tt = max(8, _round_up(-(-n_tokens // 2), 8))

    try:
        vmem_cap = int(pltpu.get_tpu_info().vmem_capacity_bytes)
    except Exception:
        vmem_cap = 64 * 1024 * 1024                            # v7x per-TC
    # ~10 MiB headroom for Mosaic internal scratch / pipeline buffers.
    budget = max(16 * 2**20, min(int(0.8 * vmem_cap), vmem_cap - 10 * 2**20))

    def vmem_estimate(tt_, weight_bufs):
        w_bytes = weight_bufs * (mm_bytes * (H * fused_n + E * c_pad)
                                 + 4 * (fused_n + c_pad))
        io_bytes = 2 * (mm_bytes * tt_ * H + out_bytes * tt_ * c_pad)
        live = (4 * tt_ * fused_n            # fused matmul output (f32)
                + mm_bytes * tt_ * K * E     # latent slab (matmul dtype)
                + 4 * tt_ * kp               # priors
                + 3 * 4 * tt_ * c_pad        # streamed decode temporaries
                + 4 * tt_ * c_pad)           # mixture accumulator
        return int(1.25 * (w_bytes + io_bytes + live))

    while tt > 8 and vmem_estimate(tt, 2) > budget:
        tt = max(8, tt // 2)

    # ---- pad tokens to a whole number of tiles -----------------------------
    pad_tok = (-n_tokens) % tt
    if pad_tok:
        x = jnp.pad(x, ((0, pad_tok), (0, 0)))
    n_rows = x.shape[0]
    grid = (n_rows // tt,)

    # ---- weight prep: fused [prior | latent] slab + padded decoder ---------
    w_pri = jnp.pad(params["wp"], ((0, 0), (0, kp - K)))                 # zeros
    w_fused = jnp.concatenate([w_pri, params["wl"]], axis=1).astype(matmul_dtype)
    b_pri = jnp.pad(params["bp"].astype(jnp.float32),
                    ((0, 0), (0, kp - K)), constant_values=-1e30)
    b_fused = jnp.concatenate([b_pri, params["bl"].astype(jnp.float32)], axis=1)
    wd = jnp.pad(params["wd"], ((0, 0), (0, c_pad - n_classes))).astype(matmul_dtype)
    bd = jnp.pad(params["bd"].astype(jnp.float32),
                 ((0, 0), (0, c_pad - n_classes)), constant_values=-1e30)

    kernel = functools.partial(_mix_softmax_kernel, n_components=K, ninp=E,
                               prior_pad=kp)

    def build(single_buffer_weights):
        def wspec(arr):
            if single_buffer_weights:
                # grid-invariant block index -> double buffering is pure waste
                return pl.BlockSpec(arr.shape, lambda i: (0, 0),
                                    pipeline_mode=pl.Buffered(1))
            return pl.BlockSpec(arr.shape, lambda i: (0, 0))
        return pl.pallas_call(
            kernel,
            out_shape=jax.ShapeDtypeStruct((n_rows, c_pad), out_dtype),
            grid_spec=pltpu.PrefetchScalarGridSpec(
                num_scalar_prefetch=0,
                grid=grid,
                in_specs=[
                    pl.BlockSpec((tt, H), lambda i: (i, 0)),   # x tile
                    wspec(w_fused), wspec(b_fused), wspec(wd), wspec(bd),
                ],
                out_specs=pl.BlockSpec((tt, c_pad), lambda i: (i, 0)),
            ),
            compiler_params=pltpu.CompilerParams(
                dimension_semantics=("parallel",),   # shards across v7x's 2 TCs
                vmem_limit_bytes=budget,
            ),
        )

    try:
        out = build(hasattr(pl, "Buffered"))(x, w_fused, b_fused, wd, bd)
    except Exception:
        # fall back to default (double-buffered) weight specs
        out = build(False)(x, w_fused, b_fused, wd, bd)

    out = out[:n_tokens, :n_classes]
    return out.reshape(*lead_shape, n_classes)


def ref_mix_softmax(context, params, *, n_components, ninp, n_classes):
    """Pure-JAX f32 reference mirroring the PyTorch forward (dropout = identity)."""
    lead_shape = context.shape[:-1]
    x = context.reshape(-1, context.shape[-1])
    priors = jax.nn.softmax(x @ params["wp"] + params["bp"], axis=-1)      # (N, K)
    lat = jnp.tanh(x @ params["wl"] + params["bl"])                        # (N, K*E)
    lat = lat.reshape(-1, n_components, ninp)                              # (N, K, E)
    dec = jax.nn.softmax(lat @ params["wd"] + params["bd"], axis=-1)       # (N, K, C)
    out = (priors[..., None] * dec).sum(axis=1)                            # (N, C)
    return out.reshape(*lead_shape, n_classes)


def init_params(key, *, nlasthid, n_components, ninp, n_classes):
    """Deterministic init; weights stored pre-transposed as [in, out]."""
    k1, k2, k3 = jax.random.split(key, 3)
    initrange = 0.1
    return {
        "wp": jax.random.uniform(k1, (nlasthid, n_components), jnp.float32,
                                 -initrange, initrange),
        "bp": jnp.zeros((1, n_components), jnp.float32),
        "wl": jax.random.uniform(k2, (nlasthid, n_components * ninp), jnp.float32,
                                 -initrange, initrange),
        "bl": jnp.zeros((1, n_components * ninp), jnp.float32),
        "wd": jax.random.uniform(k3, (ninp, n_classes), jnp.float32,
                                 -initrange, initrange),
        "bd": jnp.zeros((1, n_classes), jnp.float32),
    }


if __name__ == "__main__":
    # Small, forward-consistent shapes (3-D branch of the PyTorch module).
    batch, seq_len = 2, 8
    nlasthid, ninp = 32, 32
    n_components, n_classes = 4, 64

    key = jax.random.PRNGKey(0)
    kx, kp = jax.random.split(key)
    context = jax.random.normal(kx, (batch, seq_len, nlasthid), jnp.float32)
    params = init_params(kp, nlasthid=nlasthid, n_components=n_components,
                         ninp=ninp, n_classes=n_classes)

    out = mix_softmax(context, params, n_components=n_components,
                      ninp=ninp, n_classes=n_classes)
    out = jax.block_until_ready(out)

    ref = ref_mix_softmax(context, params, n_components=n_components,
                          ninp=ninp, n_classes=n_classes)

    assert out.shape == (batch, seq_len, n_classes)
    # bf16 matmul inputs -> bf16-level tolerances; softmax normalization is exact.
    assert jnp.allclose(out, ref, atol=2e-3, rtol=2e-2)
    # mixture of softmaxes -> rows sum to (approximately) 1
    assert jnp.allclose(out.sum(-1), jnp.ones((batch, seq_len)), atol=2e-3)

    print("KERNEL_OK")
</pallas_src>

<mosaic_0001>
module attributes {stable_mosaic.version = 11 : i64} {
  func.func @_mix_softmax_kernel(%arg0: i32, %arg1: memref<8x32xbf16, #tpu.memory_space<vmem>>, %arg2: memref<32x256xbf16, #tpu.memory_space<vmem>>, %arg3: memref<1x256xf32, #tpu.memory_space<vmem>>, %arg4: memref<32x128xbf16, #tpu.memory_space<vmem>>, %arg5: memref<1x128xf32, #tpu.memory_space<vmem>>, %arg6: memref<8x128xf32, #tpu.memory_space<vmem>>) attributes {dimension_semantics = [#tpu.dimension_semantics<parallel>], iteration_bounds = array<i64: 2>, scalar_prefetch = 0 : i64, scratch_operands = 0 : i64, tpu.core_type = #tpu.core_type<tc>, window_params = [{transform_indices = @transform_0, window_bounds = array<i64: 8, 32>}, {pipeline_mode = #tpu.pipeline_mode<synchronous>, transform_indices = @transform_1, window_bounds = array<i64: 32, 256>}, {pipeline_mode = #tpu.pipeline_mode<synchronous>, transform_indices = @transform_2, window_bounds = array<i64: 1, 256>}, {pipeline_mode = #tpu.pipeline_mode<synchronous>, transform_indices = @transform_3, window_bounds = array<i64: 32, 128>}, {pipeline_mode = #tpu.pipeline_mode<synchronous>, transform_indices = @transform_4, window_bounds = array<i64: 1, 128>}, {transform_indices = @transform_5, window_bounds = array<i64: 8, 128>}]} {
    %c0 = arith.constant 0 : index
    %c0_0 = arith.constant 0 : index
    %0 = vector.load %arg1[%c0, %c0_0] : memref<8x32xbf16, #tpu.memory_space<vmem>>, vector<8x32xbf16>
    %c0_1 = arith.constant 0 : index
    %c0_2 = arith.constant 0 : index
    %1 = vector.load %arg2[%c0_1, %c0_2] : memref<32x256xbf16, #tpu.memory_space<vmem>>, vector<32x256xbf16>
    %cst = arith.constant dense<0.000000e+00> : vector<8x256xf32>
    %2 = tpu.matmul %0, %1, %cst {dimension_numbers = #tpu.dot_dimension_numbers<[1], [0], [0], [1], [0, 0, 1, 1], [], []>} : vector<8x32xbf16>, vector<32x256xbf16>, vector<8x256xf32> -> vector<8x256xf32>
    %c0_3 = arith.constant 0 : index
    %c0_4 = arith.constant 0 : index
    %3 = vector.load %arg3[%c0_3, %c0_4] : memref<1x256xf32, #tpu.memory_space<vmem>>, vector<1x256xf32>
    %4 = vector.broadcast %3 : vector<1x256xf32> to vector<8x256xf32>
    %5 = arith.addf %2, %4 : vector<8x256xf32>
    %6 = vector.extract_strided_slice %5 {offsets = [0, 0], sizes = [8, 128], strides = [1, 1]} : vector<8x256xf32> to vector<8x128xf32>
    %cst_5 = arith.constant dense<0xFF800000> : vector<8xf32>
    %7 = vector.multi_reduction <maximumf>, %6, %cst_5 [1] : vector<8x128xf32> to vector<8xf32>
    %8 = vector.shape_cast %7 : vector<8xf32> to vector<8x1xf32>
    %9 = vector.broadcast %8 : vector<8x1xf32> to vector<8x128xf32>
    %10 = arith.subf %6, %9 : vector<8x128xf32>
    %11 = math.exp %10 : vector<8x128xf32>
    %cst_6 = arith.constant dense<0.000000e+00> : vector<8xf32>
    %12 = vector.multi_reduction <add>, %11, %cst_6 [1] : vector<8x128xf32> to vector<8xf32>
    %13 = vector.shape_cast %12 : vector<8xf32> to vector<8x1xf32>
    %14 = vector.broadcast %13 : vector<8x1xf32> to vector<8x128xf32>
    %15 = arith.divf %11, %14 : vector<8x128xf32>
    %16 = vector.extract_strided_slice %5 {offsets = [0, 128], sizes = [8, 128], strides = [1, 1]} : vector<8x256xf32> to vector<8x128xf32>
    %17 = math.tanh %16 : vector<8x128xf32>
    %18 = arith.truncf %17 : vector<8x128xf32> to vector<8x128xbf16>
    %19 = vector.extract_strided_slice %18 {offsets = [0, 0], sizes = [8, 32], strides = [1, 1]} : vector<8x128xbf16> to vector<8x32xbf16>
    %c0_7 = arith.constant 0 : index
    %c0_8 = arith.constant 0 : index
    %20 = vector.load %arg4[%c0_7, %c0_8] : memref<32x128xbf16, #tpu.memory_space<vmem>>, vector<32x128xbf16>
    %cst_9 = arith.constant dense<0.000000e+00> : vector<8x128xf32>
    %21 = tpu.matmul %19, %20, %cst_9 {dimension_numbers = #tpu.dot_dimension_numbers<[1], [0], [0], [1], [0, 0, 1, 1], [], []>} : vector<8x32xbf16>, vector<32x128xbf16>, vector<8x128xf32> -> vector<8x128xf32>
    %c0_10 = arith.constant 0 : index
    %c0_11 = arith.constant 0 : index
    %22 = vector.load %arg5[%c0_10, %c0_11] : memref<1x128xf32, #tpu.memory_space<vmem>>, vector<1x128xf32>
    %23 = vector.broadcast %22 : vector<1x128xf32> to vector<8x128xf32>
    %24 = arith.addf %21, %23 : vector<8x128xf32>
    %cst_12 = arith.constant dense<0xFF800000> : vector<8xf32>
    %25 = vector.multi_reduction <maximumf>, %24, %cst_12 [1] : vector<8x128xf32> to vector<8xf32>
    %26 = vector.shape_cast %25 : vector<8xf32> to vector<8x1xf32>
    %27 = vector.broadcast %26 : vector<8x1xf32> to vector<8x128xf32>
    %28 = arith.subf %24, %27 : vector<8x128xf32>
    %29 = math.exp %28 : vector<8x128xf32>
    %30 = vector.extract_strided_slice %15 {offsets = [0, 0], sizes = [8, 1], strides = [1, 1]} : vector<8x128xf32> to vector<8x1xf32>
    %cst_13 = arith.constant dense<0.000000e+00> : vector<8xf32>
    %31 = vector.multi_reduction <add>, %29, %cst_13 [1] : vector<8x128xf32> to vector<8xf32>
    %32 = vector.shape_cast %31 : vector<8xf32> to vector<8x1xf32>
    %33 = arith.divf %30, %32 : vector<8x1xf32>
    %34 = vector.broadcast %33 : vector<8x1xf32> to vector<8x128xf32>
    %35 = arith.mulf %34, %29 : vector<8x128xf32>
    %36 = vector.extract_strided_slice %18 {offsets = [0, 32], sizes = [8, 32], strides = [1, 1]} : vector<8x128xbf16> to vector<8x32xbf16>
    %c0_14 = arith.constant 0 : index
    %c0_15 = arith.constant 0 : index
    %37 = vector.load %arg4[%c0_14, %c0_15] : memref<32x128xbf16, #tpu.memory_space<vmem>>, vector<32x128xbf16>
    %cst_16 = arith.constant dense<0.000000e+00> : vector<8x128xf32>
    %38 = tpu.matmul %36, %37, %cst_16 {dimension_numbers = #tpu.dot_dimension_numbers<[1], [0], [0], [1], [0, 0, 1, 1], [], []>} : vector<8x32xbf16>, vector<32x128xbf16>, vector<8x128xf32> -> vector<8x128xf32>
    %c0_17 = arith.constant 0 : index
    %c0_18 = arith.constant 0 : index
    %39 = vector.load %arg5[%c0_17, %c0_18] : memref<1x128xf32, #tpu.memory_space<vmem>>, vector<1x128xf32>
    %40 = vector.broadcast %39 : vector<1x128xf32> to vector<8x128xf32>
    %41 = arith.addf %38, %40 : vector<8x128xf32>
    %cst_19 = arith.constant dense<0xFF800000> : vector<8xf32>
    %42 = vector.multi_reduction <maximumf>, %41, %cst_19 [1] : vector<8x128xf32> to vector<8xf32>
    %43 = vector.shape_cast %42 : vector<8xf32> to vector<8x1xf32>
    %44 = vector.broadcast %43 : vector<8x1xf32> to vector<8x128xf32>
    %45 = arith.subf %41, %44 : vector<8x128xf32>
    %46 = math.exp %45 : vector<8x128xf32>
    %47 = vector.extract_strided_slice %15 {offsets = [0, 1], sizes = [8, 1], strides = [1, 1]} : vector<8x128xf32> to vector<8x1xf32>
    %cst_20 = arith.constant dense<0.000000e+00> : vector<8xf32>
    %48 = vector.multi_reduction <add>, %46, %cst_20 [1] : vector<8x128xf32> to vector<8xf32>
    %49 = vector.shape_cast %48 : vector<8xf32> to vector<8x1xf32>
    %50 = arith.divf %47, %49 : vector<8x1xf32>
    %51 = vector.broadcast %50 : vector<8x1xf32> to vector<8x128xf32>
    %52 = arith.mulf %51, %46 : vector<8x128xf32>
    %53 = arith.addf %35, %52 : vector<8x128xf32>
    %54 = vector.extract_strided_slice %18 {offsets = [0, 64], sizes = [8, 32], strides = [1, 1]} : vector<8x128xbf16> to vector<8x32xbf16>
    %c0_21 = arith.constant 0 : index
    %c0_22 = arith.constant 0 : index
    %55 = vector.load %arg4[%c0_21, %c0_22] : memref<32x128xbf16, #tpu.memory_space<vmem>>, vector<32x128xbf16>
    %cst_23 = arith.constant dense<0.000000e+00> : vector<8x128xf32>
    %56 = tpu.matmul %54, %55, %cst_23 {dimension_numbers = #tpu.dot_dimension_numbers<[1], [0], [0], [1], [0, 0, 1, 1], [], []>} : vector<8x32xbf16>, vector<32x128xbf16>, vector<8x128xf32> -> vector<8x128xf32>
    %c0_24 = arith.constant 0 : index
    %c0_25 = arith.constant 0 : index
    %57 = vector.load %arg5[%c0_24, %c0_25] : memref<1x128xf32, #tpu.memory_space<vmem>>, vector<1x128xf32>
    %58 = vector.broadcast %57 : vector<1x128xf32> to vector<8x128xf32>
    %59 = arith.addf %56, %58 : vector<8x128xf32>
    %cst_26 = arith.constant dense<0xFF800000> : vector<8xf32>
    %60 = vector.multi_reduction <maximumf>, %59, %cst_26 [1] : vector<8x128xf32> to vector<8xf32>
    %61 = vector.shape_cast %60 : vector<8xf32> to vector<8x1xf32>
    %62 = vector.broadcast %61 : vector<8x1xf32> to vector<8x128xf32>
    %63 = arith.subf %59, %62 : vector<8x128xf32>
    %64 = math.exp %63 : vector<8x128xf32>
    %65 = vector.extract_strided_slice %15 {offsets = [0, 2], sizes = [8, 1], strides = [1, 1]} : vector<8x128xf32> to vector<8x1xf32>
    %cst_27 = arith.constant dense<0.000000e+00> : vector<8xf32>
    %66 = vector.multi_reduction <add>, %64, %cst_27 [1] : vector<8x128xf32> to vector<8xf32>
    %67 = vector.shape_cast %66 : vector<8xf32> to vector<8x1xf32>
    %68 = arith.divf %65, %67 : vector<8x1xf32>
    %69 = vector.broadcast %68 : vector<8x1xf32> to vector<8x128xf32>
    %70 = arith.mulf %69, %64 : vector<8x128xf32>
    %71 = arith.addf %53, %70 : vector<8x128xf32>
    %72 = vector.extract_strided_slice %18 {offsets = [0, 96], sizes = [8, 32], strides = [1, 1]} : vector<8x128xbf16> to vector<8x32xbf16>
    %c0_28 = arith.constant 0 : index
    %c0_29 = arith.constant 0 : index
    %73 = vector.load %arg4[%c0_28, %c0_29] : memref<32x128xbf16, #tpu.memory_space<vmem>>, vector<32x128xbf16>
    %cst_30 = arith.constant dense<0.000000e+00> : vector<8x128xf32>
    %74 = tpu.matmul %72, %73, %cst_30 {dimension_numbers = #tpu.dot_dimension_numbers<[1], [0], [0], [1], [0, 0, 1, 1], [], []>} : vector<8x32xbf16>, vector<32x128xbf16>, vector<8x128xf32> -> vector<8x128xf32>
    %c0_31 = arith.constant 0 : index
    %c0_32 = arith.constant 0 : index
    %75 = vector.load %arg5[%c0_31, %c0_32] : memref<1x128xf32, #tpu.memory_space<vmem>>, vector<1x128xf32>
    %76 = vector.broadcast %75 : vector<1x128xf32> to vector<8x128xf32>
    %77 = arith.addf %74, %76 : vector<8x128xf32>
    %cst_33 = arith.constant dense<0xFF800000> : vector<8xf32>
    %78 = vector.multi_reduction <maximumf>, %77, %cst_33 [1] : vector<8x128xf32> to vector<8xf32>
    %79 = vector.shape_cast %78 : vector<8xf32> to vector<8x1xf32>
    %80 = vector.broadcast %79 : vector<8x1xf32> to vector<8x128xf32>
    %81 = arith.subf %77, %80 : vector<8x128xf32>
    %82 = math.exp %81 : vector<8x128xf32>
    %83 = vector.extract_strided_slice %15 {offsets = [0, 3], sizes = [8, 1], strides = [1, 1]} : vector<8x128xf32> to vector<8x1xf32>
    %cst_34 = arith.constant dense<0.000000e+00> : vector<8xf32>
    %84 = vector.multi_reduction <add>, %82, %cst_34 [1] : vector<8x128xf32> to vector<8xf32>
    %85 = vector.shape_cast %84 : vector<8xf32> to vector<8x1xf32>
    %86 = arith.divf %83, %85 : vector<8x1xf32>
    %87 = vector.broadcast %86 : vector<8x1xf32> to vector<8x128xf32>
    %88 = arith.mulf %87, %82 : vector<8x128xf32>
    %89 = arith.addf %71, %88 : vector<8x128xf32>
    %c0_35 = arith.constant 0 : index
    %c0_36 = arith.constant 0 : index
    %90 = vector.load %arg6[%c0_35, %c0_36] : memref<8x128xf32, #tpu.memory_space<vmem>>, vector<8x128xf32>
    tpu.vector_store %arg6[%c0_35, %c0_36], %89 {strides = array<i32>} : memref<8x128xf32, #tpu.memory_space<vmem>>, vector<8x128xf32>,
    return
  }
  func.func @transform_0(%arg0: i32) -> (i32, i32) {
    %c0_i32 = arith.constant 0 : i32
    %c0_i32_0 = arith.constant 0 : i32
    return %arg0, %c0_i32 : i32, i32
  }
  func.func @transform_1(%arg0: i32) -> (i32, i32) {
    %c0_i32 = arith.constant 0 : i32
    %c0_i32_0 = arith.constant 0 : i32
    %c0_i32_1 = arith.constant 0 : i32
    return %c0_i32, %c0_i32_0 : i32, i32
  }
  func.func @transform_2(%arg0: i32) -> (i32, i32) {
    %c0_i32 = arith.constant 0 : i32
    %c0_i32_0 = arith.constant 0 : i32
    %c0_i32_1 = arith.constant 0 : i32
    return %c0_i32, %c0_i32_0 : i32, i32
  }
  func.func @transform_3(%arg0: i32) -> (i32, i32) {
    %c0_i32 = arith.constant 0 : i32
    %c0_i32_0 = arith.constant 0 : i32
    %c0_i32_1 = arith.constant 0 : i32
    return %c0_i32, %c0_i32_0 : i32, i32
  }
  func.func @transform_4(%arg0: i32) -> (i32, i32) {
    %c0_i32 = arith.constant 0 : i32
    %c0_i32_0 = arith.constant 0 : i32
    %c0_i32_1 = arith.constant 0 : i32
    return %c0_i32, %c0_i32_0 : i32, i32
  }
  func.func @transform_5(%arg0: i32) -> (i32, i32) {
    %c0_i32 = arith.constant 0 : i32
    %c0_i32_0 = arith.constant 0 : i32
    return %arg0, %c0_i32 : i32, i32
  }
}

module attributes {stable_mosaic.version = 11 : i64} {
  func.func @_mix_softmax_kernel(%arg0: i32, %arg1: memref<8x32xbf16, #tpu.memory_space<vmem>>, %arg2: memref<32x256xbf16, #tpu.memory_space<vmem>>, %arg3: memref<1x256xf32, #tpu.memory_space<vmem>>, %arg4: memref<32x128xbf16, #tpu.memory_space<vmem>>, %arg5: memref<1x128xf32, #tpu.memory_space<vmem>>, %arg6: memref<8x128xf32, #tpu.memory_space<vmem>>) attributes {dimension_semantics = [#tpu.dimension_semantics<parallel>], iteration_bounds = array<i64: 2>, scalar_prefetch = 0 : i64, scratch_operands = 0 : i64, tpu.core_type = #tpu.core_type<tc>, window_params = [{transform_indices = @transform_0, window_bounds = array<i64: 8, 32>}, {pipeline_mode = #tpu.pipeline_mode<synchronous>, transform_indices = @transform_1, window_bounds = array<i64: 32, 256>}, {pipeline_mode = #tpu.pipeline_mode<synchronous>, transform_indices = @transform_2, window_bounds = array<i64: 1, 256>}, {pipeline_mode = #tpu.pipeline_mode<synchronous>, transform_indices = @transform_3, window_bounds = array<i64: 32, 128>}, {pipeline_mode = #tpu.pipeline_mode<synchronous>, transform_indices = @transform_4, window_bounds = array<i64: 1, 128>}, {transform_indices = @transform_5, window_bounds = array<i64: 8, 128>}]} {
    %c0 = arith.constant 0 : index
    %c0_0 = arith.constant 0 : index
    %0 = vector.load %arg1[%c0, %c0_0] : memref<8x32xbf16, #tpu.memory_space<vmem>>, vector<8x32xbf16>
    %c0_1 = arith.constant 0 : index
    %c0_2 = arith.constant 0 : index
    %1 = vector.load %arg2[%c0_1, %c0_2] : memref<32x256xbf16, #tpu.memory_space<vmem>>, vector<32x256xbf16>
    %cst = arith.constant dense<0.000000e+00> : vector<8x256xf32>
    %2 = tpu.matmul %0, %1, %cst {dimension_numbers = #tpu.dot_dimension_numbers<[1], [0], [0], [1], [0, 0, 1, 1], [], []>} : vector<8x32xbf16>, vector<32x256xbf16>, vector<8x256xf32> -> vector<8x256xf32>
    %c0_3 = arith.constant 0 : index
    %c0_4 = arith.constant 0 : index
    %3 = vector.load %arg3[%c0_3, %c0_4] : memref<1x256xf32, #tpu.memory_space<vmem>>, vector<1x256xf32>
    %4 = vector.broadcast %3 : vector<1x256xf32> to vector<8x256xf32>
    %5 = arith.addf %2, %4 : vector<8x256xf32>
    %6 = vector.extract_strided_slice %5 {offsets = [0, 0], sizes = [8, 128], strides = [1, 1]} : vector<8x256xf32> to vector<8x128xf32>
    %cst_5 = arith.constant dense<0xFF800000> : vector<8xf32>
    %7 = vector.multi_reduction <maximumf>, %6, %cst_5 [1] : vector<8x128xf32> to vector<8xf32>
    %8 = vector.shape_cast %7 : vector<8xf32> to vector<8x1xf32>
    %9 = vector.broadcast %8 : vector<8x1xf32> to vector<8x128xf32>
    %10 = arith.subf %6, %9 : vector<8x128xf32>
    %11 = math.exp %10 : vector<8x128xf32>
    %cst_6 = arith.constant dense<0.000000e+00> : vector<8xf32>
    %12 = vector.multi_reduction <add>, %11, %cst_6 [1] : vector<8x128xf32> to vector<8xf32>
    %13 = vector.shape_cast %12 : vector<8xf32> to vector<8x1xf32>
    %14 = vector.broadcast %13 : vector<8x1xf32> to vector<8x128xf32>
    %15 = arith.divf %11, %14 : vector<8x128xf32>
    %16 = vector.extract_strided_slice %5 {offsets = [0, 128], sizes = [8, 128], strides = [1, 1]} : vector<8x256xf32> to vector<8x128xf32>
    %17 = math.tanh %16 : vector<8x128xf32>
    %18 = arith.truncf %17 : vector<8x128xf32> to vector<8x128xbf16>
    %19 = vector.extract_strided_slice %18 {offsets = [0, 0], sizes = [8, 32], strides = [1, 1]} : vector<8x128xbf16> to vector<8x32xbf16>
    %c0_7 = arith.constant 0 : index
    %c0_8 = arith.constant 0 : index
    %20 = vector.load %arg4[%c0_7, %c0_8] : memref<32x128xbf16, #tpu.memory_space<vmem>>, vector<32x128xbf16>
    %cst_9 = arith.constant dense<0.000000e+00> : vector<8x128xf32>
    %21 = tpu.matmul %19, %20, %cst_9 {dimension_numbers = #tpu.dot_dimension_numbers<[1], [0], [0], [1], [0, 0, 1, 1], [], []>} : vector<8x32xbf16>, vector<32x128xbf16>, vector<8x128xf32> -> vector<8x128xf32>
    %c0_10 = arith.constant 0 : index
    %c0_11 = arith.constant 0 : index
    %22 = vector.load %arg5[%c0_10, %c0_11] : memref<1x128xf32, #tpu.memory_space<vmem>>, vector<1x128xf32>
    %23 = vector.broadcast %22 : vector<1x128xf32> to vector<8x128xf32>
    %24 = arith.addf %21, %23 : vector<8x128xf32>
    %cst_12 = arith.constant dense<0xFF800000> : vector<8xf32>
    %25 = vector.multi_reduction <maximumf>, %24, %cst_12 [1] : vector<8x128xf32> to vector<8xf32>
    %26 = vector.shape_cast %25 : vector<8xf32> to vector<8x1xf32>
    %27 = vector.broadcast %26 : vector<8x1xf32> to vector<8x128xf32>
    %28 = arith.subf %24, %27 : vector<8x128xf32>
    %29 = math.exp %28 : vector<8x128xf32>
    %30 = vector.extract_strided_slice %15 {offsets = [0, 0], sizes = [8, 1], strides = [1, 1]} : vector<8x128xf32> to vector<8x1xf32>
    %cst_13 = arith.constant dense<0.000000e+00> : vector<8xf32>
    %31 = vector.multi_reduction <add>, %29, %cst_13 [1] : vector<8x128xf32> to vector<8xf32>
    %32 = vector.shape_cast %31 : vector<8xf32> to vector<8x1xf32>
    %33 = arith.divf %30, %32 : vector<8x1xf32>
    %34 = vector.broadcast %33 : vector<8x1xf32> to vector<8x128xf32>
    %35 = arith.mulf %34, %29 : vector<8x128xf32>
    %36 = vector.extract_strided_slice %18 {offsets = [0, 32], sizes = [8, 32], strides = [1, 1]} : vector<8x128xbf16> to vector<8x32xbf16>
    %c0_14 = arith.constant 0 : index
    %c0_15 = arith.constant 0 : index
    %37 = vector.load %arg4[%c0_14, %c0_15] : memref<32x128xbf16, #tpu.memory_space<vmem>>, vector<32x128xbf16>
    %cst_16 = arith.constant dense<0.000000e+00> : vector<8x128xf32>
    %38 = tpu.matmul %36, %37, %cst_16 {dimension_numbers = #tpu.dot_dimension_numbers<[1], [0], [0], [1], [0, 0, 1, 1], [], []>} : vector<8x32xbf16>, vector<32x128xbf16>, vector<8x128xf32> -> vector<8x128xf32>
    %c0_17 = arith.constant 0 : index
    %c0_18 = arith.constant 0 : index
    %39 = vector.load %arg5[%c0_17, %c0_18] : memref<1x128xf32, #tpu.memory_space<vmem>>, vector<1x128xf32>
    %40 = vector.broadcast %39 : vector<1x128xf32> to vector<8x128xf32>
    %41 = arith.addf %38, %40 : vector<8x128xf32>
    %cst_19 = arith.constant dense<0xFF800000> : vector<8xf32>
    %42 = vector.multi_reduction <maximumf>, %41, %cst_19 [1] : vector<8x128xf32> to vector<8xf32>
    %43 = vector.shape_cast %42 : vector<8xf32> to vector<8x1xf32>
    %44 = vector.broadcast %43 : vector<8x1xf32> to vector<8x128xf32>
    %45 = arith.subf %41, %44 : vector<8x128xf32>
    %46 = math.exp %45 : vector<8x128xf32>
    %47 = vector.extract_strided_slice %15 {offsets = [0, 1], sizes = [8, 1], strides = [1, 1]} : vector<8x128xf32> to vector<8x1xf32>
    %cst_20 = arith.constant dense<0.000000e+00> : vector<8xf32>
    %48 = vector.multi_reduction <add>, %46, %cst_20 [1] : vector<8x128xf32> to vector<8xf32>
    %49 = vector.shape_cast %48 : vector<8xf32> to vector<8x1xf32>
    %50 = arith.divf %47, %49 : vector<8x1xf32>
    %51 = vector.broadcast %50 : vector<8x1xf32> to vector<8x128xf32>
    %52 = arith.mulf %51, %46 : vector<8x128xf32>
    %53 = arith.addf %35, %52 : vector<8x128xf32>
    %54 = vector.extract_strided_slice %18 {offsets = [0, 64], sizes = [8, 32], strides = [1, 1]} : vector<8x128xbf16> to vector<8x32xbf16>
    %c0_21 = arith.constant 0 : index
    %c0_22 = arith.constant 0 : index
    %55 = vector.load %arg4[%c0_21, %c0_22] : memref<32x128xbf16, #tpu.memory_space<vmem>>, vector<32x128xbf16>
    %cst_23 = arith.constant dense<0.000000e+00> : vector<8x128xf32>
    %56 = tpu.matmul %54, %55, %cst_23 {dimension_numbers = #tpu.dot_dimension_numbers<[1], [0], [0], [1], [0, 0, 1, 1], [], []>} : vector<8x32xbf16>, vector<32x128xbf16>, vector<8x128xf32> -> vector<8x128xf32>
    %c0_24 = arith.constant 0 : index
    %c0_25 = arith.constant 0 : index
    %57 = vector.load %arg5[%c0_24, %c0_25] : memref<1x128xf32, #tpu.memory_space<vmem>>, vector<1x128xf32>
    %58 = vector.broadcast %57 : vector<1x128xf32> to vector<8x128xf32>
    %59 = arith.addf %56, %58 : vector<8x128xf32>
    %cst_26 = arith.constant dense<0xFF800000> : vector<8xf32>
    %60 = vector.multi_reduction <maximumf>, %59, %cst_26 [1] : vector<8x128xf32> to vector<8xf32>
    %61 = vector.shape_cast %60 : vector<8xf32> to vector<8x1xf32>
    %62 = vector.broadcast %61 : vector<8x1xf32> to vector<8x128xf32>
    %63 = arith.subf %59, %62 : vector<8x128xf32>
    %64 = math.exp %63 : vector<8x128xf32>
    %65 = vector.extract_strided_slice %15 {offsets = [0, 2], sizes = [8, 1], strides = [1, 1]} : vector<8x128xf32> to vector<8x1xf32>
    %cst_27 = arith.constant dense<0.000000e+00> : vector<8xf32>
    %66 = vector.multi_reduction <add>, %64, %cst_27 [1] : vector<8x128xf32> to vector<8xf32>
    %67 = vector.shape_cast %66 : vector<8xf32> to vector<8x1xf32>
    %68 = arith.divf %65, %67 : vector<8x1xf32>
    %69 = vector.broadcast %68 : vector<8x1xf32> to vector<8x128xf32>
    %70 = arith.mulf %69, %64 : vector<8x128xf32>
    %71 = arith.addf %53, %70 : vector<8x128xf32>
    %72 = vector.extract_strided_slice %18 {offsets = [0, 96], sizes = [8, 32], strides = [1, 1]} : vector<8x128xbf16> to vector<8x32xbf16>
    %c0_28 = arith.constant 0 : index
    %c0_29 = arith.constant 0 : index
    %73 = vector.load %arg4[%c0_28, %c0_29] : memref<32x128xbf16, #tpu.memory_space<vmem>>, vector<32x128xbf16>
    %cst_30 = arith.constant dense<0.000000e+00> : vector<8x128xf32>
    %74 = tpu.matmul %72, %73, %cst_30 {dimension_numbers = #tpu.dot_dimension_numbers<[1], [0], [0], [1], [0, 0, 1, 1], [], []>} : vector<8x32xbf16>, vector<32x128xbf16>, vector<8x128xf32> -> vector<8x128xf32>
    %c0_31 = arith.constant 0 : index
    %c0_32 = arith.constant 0 : index
    %75 = vector.load %arg5[%c0_31, %c0_32] : memref<1x128xf32, #tpu.memory_space<vmem>>, vector<1x128xf32>
    %76 = vector.broadcast %75 : vector<1x128xf32> to vector<8x128xf32>
    %77 = arith.addf %74, %76 : vector<8x128xf32>
    %cst_33 = arith.constant dense<0xFF800000> : vector<8xf32>
    %78 = vector.multi_reduction <maximumf>, %77, %cst_33 [1] : vector<8x128xf32> to vector<8xf32>
    %79 = vector.shape_cast %78 : vector<8xf32> to vector<8x1xf32>
    %80 = vector.broadcast %79 : vector<8x1xf32> to vector<8x128xf32>
    %81 = arith.subf %77, %80 : vector<8x128xf32>
    %82 = math.exp %81 : vector<8x128xf32>
    %83 = vector.extract_strided_slice %15 {offsets = [0, 3], sizes = [8, 1], strides = [1, 1]} : vector<8x128xf32> to vector<8x1xf32>
    %cst_34 = arith.constant dense<0.000000e+00> : vector<8xf32>
    %84 = vector.multi_reduction <add>, %82, %cst_34 [1] : vector<8x128xf32> to vector<8xf32>
    %85 = vector.shape_cast %84 : vector<8xf32> to vector<8x1xf32>
    %86 = arith.divf %83, %85 : vector<8x1xf32>
    %87 = vector.broadcast %86 : vector<8x1xf32> to vector<8x128xf32>
    %88 = arith.mulf %87, %82 : vector<8x128xf32>
    %89 = arith.addf %71, %88 : vector<8x128xf32>
    %c0_35 = arith.constant 0 : index
    %c0_36 = arith.constant 0 : index
    %90 = vector.load %arg6[%c0_35, %c0_36] : memref<8x128xf32, #tpu.memory_space<vmem>>, vector<8x128xf32>
    tpu.vector_store %arg6[%c0_35, %c0_36], %89 {strides = array<i32>} : memref<8x128xf32, #tpu.memory_space<vmem>>, vector<8x128xf32>,
    return
  }
  func.func @transform_0(%arg0: i32) -> (i32, i32) {
    %c0_i32 = arith.constant 0 : i32
    %c0_i32_0 = arith.constant 0 : i32
    return %arg0, %c0_i32 : i32, i32
  }
  func.func @transform_1(%arg0: i32) -> (i32, i32) {
    %c0_i32 = arith.constant 0 : i32
    %c0_i32_0 = arith.constant 0 : i32
    %c0_i32_1 = arith.constant 0 : i32
    return %c0_i32, %c0_i32_0 : i32, i32
  }
  func.func @transform_2(%arg0: i32) -> (i32, i32) {
    %c0_i32 = arith.constant 0 : i32
    %c0_i32_0 = arith.constant 0 : i32
    %c0_i32_1 = arith.constant 0 : i32
    return %c0_i32, %c0_i32_0 : i32, i32
  }
  func.func @transform_3(%arg0: i32) -> (i32, i32) {
    %c0_i32 = arith.constant 0 : i32
    %c0_i32_0 = arith.constant 0 : i32
    %c0_i32_1 = arith.constant 0 : i32
    return %c0_i32, %c0_i32_0 : i32, i32
  }
  func.func @transform_4(%arg0: i32) -> (i32, i32) {
    %c0_i32 = arith.constant 0 : i32
    %c0_i32_0 = arith.constant 0 : i32
    %c0_i32_1 = arith.constant 0 : i32
    return %c0_i32, %c0_i32_0 : i32, i32
  }
  func.func @transform_5(%arg0: i32) -> (i32, i32) {
    %c0_i32 = arith.constant 0 : i32
    %c0_i32_0 = arith.constant 0 : i32
    return %arg0, %c0_i32 : i32, i32
  }
}

</mosaic_0001>

<llo_original>
// kernel: tpu_custom_call.1
$region0: #{tpu_custom_call.1}
  #allocation0 [shape = 'u32[]', space=smem, size = 0x4, offset = 0x4, fixed_abs, tag = 'smem constant byte address 0x4 - core index']
  #allocation1 [shape = 'u32[144,128]{1,0:T(1,128)}', space=vmem, size = 0x12000, scoped, tag = 'internal scratch']
  %s0 = inlined_call_operand.hbm [shape: bf16[16,32], index: 0, kind: input, shape index: {}]
  %s1 = inlined_call_operand.hbm [shape: bf16[32,256], index: 1, kind: input, shape index: {}]
  %s2 = inlined_call_operand.vmem [shape: f32[1,256], index: 2, kind: input, shape index: {}]
  %s3 = inlined_call_operand.hbm [shape: bf16[32,128], index: 3, kind: input, shape index: {}]
  %s4 = inlined_call_operand.vmem [shape: f32[1,128], index: 4, kind: input, shape index: {}]
  %s5 = inlined_call_operand.hbm [shape: f32[16,128], index: 5, kind: output, shape index: {}]
  %s6 = sld [smem:[#allocation0]]
  $region65: #{tpu_custom_call.1} parent=0
    _
  %s8 = ssub.s32 1, %s6
  %s9 = scalar_select 0, %s8, %s6
  $region1: #{tpu_custom_call.1} parent=0
    #allocation2 [shape = 'u8[4096]{0}', space=vmem, size = 0x1000, scoped, tag = 'input window, operand 0']
    #allocation3 [shape = 's32[2]{0}', space=sflag, size = 0x8, scoped, tag = 'scoped memory for tpu_custom_call.1']
    #allocation4 [shape = 's32[2]{0}', space=sflag, size = 0x8, scoped, tag = 'scoped memory for tpu_custom_call.1']
    #allocation5 [shape = 'u8[16384]{0}', space=vmem, size = 0x4000, scoped, tag = 'input window, operand 1, single buffered']
    #allocation6 [shape = 's32[1]{0}', space=sflag, size = 0x4, scoped, tag = 'scoped memory for tpu_custom_call.1']
    #allocation7 [shape = 'u8[8192]{0}', space=vmem, size = 0x2000, scoped, tag = 'input window, operand 3, single buffered']
    #allocation8 [shape = 'u8[8192]{0}', space=vmem, size = 0x2000, scoped, tag = 'output window, operand 0']
    %10 = vsyncpa [#allocation3], 0
    %s11 = scalar_lea.sflag [#allocation3], 1
    %12 = vsyncpa %s11, 0
    %13 = vsyncpa [#allocation6], 0
    %14 = vsyncpa [#allocation4], 0
    %s15 = scalar_lea.sflag [#allocation4], 1
    %16 = vsyncpa %s15, 0
    loop: start=0, step=1, limit=4
    $region2: #{tpu_custom_call.1} parent=1 // loop_pre_header
      _
    $region3: #{tpu_custom_call.1} parent=1 // loop_header
      %s18 = sphi 0, %s22
      %p19 = scmp.ge.s32.totalorder %s18, 4
      %s28 = sphi 0, %s30
      %s31 = sphi 0, %s28
      %s32 = sphi 0, %s31
      %s48 = sphi 0, %s32
      %s52 = sphi 0, %s52
      %s54 = sphi 0, %s52
      %s55 = sphi 0, %s54
      %s69 = sphi 0, %s55
      %s73 = sphi 0, %s73
      %s75 = sphi 0, %s73
      %s76 = sphi 0, %s75
      %s90 = sphi 0, %s76
      %s94 = sphi 0, %s94
      %s96 = sphi 0, %s94
      %s97 = sphi 0, %s96
      %s111 = sphi 0, %s97
      %s115 = sphi 0, %s115
      %s117 = sphi 0, %s115
      %s118 = sphi 0, %s117
      %s132 = sphi 0, %s118
      %s138 = sphi 0, %s140
      %s141 = sphi 0, %s138
      %s142 = sphi 0, %s141
      %s158 = sphi 0, %s142
    $region4: #{tpu_custom_call.1} parent=1 // loop_header_branch
      %21 = sbr.rel (%p19) target = $region8
    $region5: #{tpu_custom_call.1} parent=1 // loop_body
      %s23 = ssub.s32 %s18, 1
      %s24 = ssub.s32 %s18, 2
      %s25 = sadd.s32 %s18, 1
      %s26 = ssub.s32 %s18, %s25
      %p27 = scmp.eq.s32.totalorder %s26, 0
      %s29 = sadd.s32 %s28, 1
      %s30 = scalar_select %p27, %s28, %s29
      %p33 = pneg %p27
      %p34 = scmp.eq.s32.totalorder %s18, 1
      %p35 = por %p33, %p34
      %p36 = scmp.ne.s32.totalorder %s28, %s31
      %p37 = scmp.eq.s32.totalorder %s18, 0
      %p38 = por %p36, %p37
      %p39 = scmp.ne.s32.totalorder %s28, %s31
      %p40 = scmp.eq.s32.totalorder %s23, 1
      %p41 = por %p39, %p40
      %p42 = scmp.ne.s32.totalorder %s31, %s32
      %p43 = scmp.eq.s32.totalorder %s23, 0
      %p44 = por %p42, %p43
      %p45 = scmp.ne.s32.totalorder %s31, %s32
      %p46 = scmp.eq.s32.totalorder %s24, 1
      %p47 = por %p45, %p46
      %p49 = scmp.ne.s32.totalorder %s32, %s48
      %p50 = scmp.eq.s32.totalorder %s24, 0
      %p51 = por %p49, %p50
      %s53 = sadd.s32 %s52, 1
      %p56 = scmp.eq.s32.totalorder %s18, 1
      %p57 = scmp.ne.s32.totalorder %s52, %s54
      %p58 = scmp.eq.s32.totalorder %s18, 0
      %p59 = por %p57, %p58
      %p60 = scmp.ne.s32.totalorder %s52, %s54
      %p61 = scmp.eq.s32.totalorder %s23, 1
      %p62 = por %p60, %p61
      %p63 = scmp.ne.s32.totalorder %s54, %s55
      %p64 = scmp.eq.s32.totalorder %s23, 0
      %p65 = por %p63, %p64
      %p66 = scmp.ne.s32.totalorder %s54, %s55
      %p67 = scmp.eq.s32.totalorder %s24, 1
      %p68 = por %p66, %p67
      %p70 = scmp.ne.s32.totalorder %s55, %s69
      %p71 = scmp.eq.s32.totalorder %s24, 0
      %p72 = por %p70, %p71
      %s74 = sadd.s32 %s73, 1
      %p77 = scmp.eq.s32.totalorder %s18, 1
      %p78 = scmp.ne.s32.totalorder %s73, %s75
      %p79 = scmp.eq.s32.totalorder %s18, 0
      %p80 = por %p78, %p79
      %p81 = scmp.ne.s32.totalorder %s73, %s75
      %p82 = scmp.eq.s32.totalorder %s23, 1
      %p83 = por %p81, %p82
      %p84 = scmp.ne.s32.totalorder %s75, %s76
      %p85 = scmp.eq.s32.totalorder %s23, 0
      %p86 = por %p84, %p85
      %p87 = scmp.ne.s32.totalorder %s75, %s76
      %p88 = scmp.eq.s32.totalorder %s24, 1
      %p89 = por %p87, %p88
      %p91 = scmp.ne.s32.totalorder %s76, %s90
      %p92 = scmp.eq.s32.totalorder %s24, 0
      %p93 = por %p91, %p92
      %s95 = sadd.s32 %s94, 1
      %p98 = scmp.eq.s32.totalorder %s18, 1
      %p99 = scmp.ne.s32.totalorder %s94, %s96
      %p100 = scmp.eq.s32.totalorder %s18, 0
      %p101 = por %p99, %p100
      %p102 = scmp.ne.s32.totalorder %s94, %s96
      %p103 = scmp.eq.s32.totalorder %s23, 1
      %p104 = por %p102, %p103
      %p105 = scmp.ne.s32.totalorder %s96, %s97
      %p106 = scmp.eq.s32.totalorder %s23, 0
      %p107 = por %p105, %p106
      %p108 = scmp.ne.s32.totalorder %s96, %s97
      %p109 = scmp.eq.s32.totalorder %s24, 1
      %p110 = por %p108, %p109
      %p112 = scmp.ne.s32.totalorder %s97, %s111
      %p113 = scmp.eq.s32.totalorder %s24, 0
      %p114 = por %p112, %p113
      %s116 = sadd.s32 %s115, 1
      %p119 = scmp.eq.s32.totalorder %s18, 1
      %p120 = scmp.ne.s32.totalorder %s115, %s117
      %p121 = scmp.eq.s32.totalorder %s18, 0
      %p122 = por %p120, %p121
      %p123 = scmp.ne.s32.totalorder %s115, %s117
      %p124 = scmp.eq.s32.totalorder %s23, 1
      %p125 = por %p123, %p124
      %p126 = scmp.ne.s32.totalorder %s117, %s118
      %p127 = scmp.eq.s32.totalorder %s23, 0
      %p128 = por %p126, %p127
      %p129 = scmp.ne.s32.totalorder %s117, %s118
      %p130 = scmp.eq.s32.totalorder %s24, 1
      %p131 = por %p129, %p130
      %p133 = scmp.ne.s32.totalorder %s118, %s132
      %p134 = scmp.eq.s32.totalorder %s24, 0
      %p135 = por %p133, %p134
      %s136 = ssub.s32 %s18, %s25
      %p137 = scmp.eq.s32.totalorder %s136, 0
      %s139 = sadd.s32 %s138, 1
      %s140 = scalar_select %p137, %s138, %s139
      %p143 = pneg %p137
      %p144 = scmp.eq.s32.totalorder %s18, 1
      %p145 = por %p143, %p144
      %p146 = scmp.ne.s32.totalorder %s138, %s141
      %p147 = scmp.eq.s32.totalorder %s18, 0
      %p148 = por %p146, %p147
      %p149 = scmp.ne.s32.totalorder %s138, %s141
      %p150 = scmp.eq.s32.totalorder %s23, 1
      %p151 = por %p149, %p150
      %p152 = scmp.ne.s32.totalorder %s141, %s142
      %p153 = scmp.eq.s32.totalorder %s23, 0
      %p154 = por %p152, %p153
      %p155 = scmp.ne.s32.totalorder %s141, %s142
      %p156 = scmp.eq.s32.totalorder %s24, 1
      %p157 = por %p155, %p156
      %p159 = scmp.ne.s32.totalorder %s142, %s158
      %p160 = scmp.eq.s32.totalorder %s24, 0
      %p161 = por %p159, %p160
      %p162 = scmp.le.s32.totalorder 1, %s18
      %p163 = scmp.lt.s32.totalorder %s18, 3
      %p164 = pnand %p162, %p163
      %p165 = pneg %p164
      // Predicated region
      $region9: #{tpu_custom_call.1} parent=5 // pred_check
        _
      $region10: #{tpu_custom_call.1} parent=5 // pred_check_branch
        %167 = sbr.rel (%p164) target = $region12
      $region11: #{tpu_custom_call.1} parent=5 // pred_region
        %s168 = ssub.s32 %s18, 1
        // Predicated region
        $region13: #{tpu_custom_call.1} parent=11 // pred_check
          %p169 = pneg %p65
        $region14: #{tpu_custom_call.1} parent=11 // pred_check_branch
          %171 = sbr.rel (%p169) target = $region16
        $region15: #{tpu_custom_call.1} parent=11 // pred_region
          %s173 = ssub.s32 512, 512
          %174 = vsyncadd [#allocation6], %s173
          %s175 = sshll.u32 [#allocation5], 4
          %s176 = int_to_ptr.vmem [resolvable:$true] %s175
          %181 = dma.hbm_to_vmem [thread:$0]  %s1, 512, %s176, [#allocation6], 128, 128, 8
        $region16: #{tpu_custom_call.1} parent=11 // pred_fallthru
          _
        // Predicated region
        $region17: #{tpu_custom_call.1} parent=11 // pred_check
          %p182 = pneg %p86
        $region18: #{tpu_custom_call.1} parent=11 // pred_check_branch
          %184 = sbr.rel (%p182) target = $region20
        $region19: #{tpu_custom_call.1} parent=11 // pred_region
          _
        $region20: #{tpu_custom_call.1} parent=11 // pred_fallthru
          _
        // Predicated region
        $region21: #{tpu_custom_call.1} parent=11 // pred_check
          %p185 = pneg %p107
        $region22: #{tpu_custom_call.1} parent=11 // pred_check_branch
          %187 = sbr.rel (%p185) target = $region24
        $region23: #{tpu_custom_call.1} parent=11 // pred_region
          %s189 = ssub.s32 256, 256
          %190 = vsyncadd [#allocation6], %s189
          %s191 = sshll.u32 [#allocation7], 4
          %s192 = int_to_ptr.vmem [resolvable:$true] %s191
          %197 = dma.hbm_to_vmem [thread:$0]  %s3, 256, %s192, [#allocation6], 64, 64, 4
        $region24: #{tpu_custom_call.1} parent=11 // pred_fallthru
          _
        // Predicated region
        $region25: #{tpu_custom_call.1} parent=11 // pred_check
          %p198 = pneg %p128
        $region26: #{tpu_custom_call.1} parent=11 // pred_check_branch
          %200 = sbr.rel (%p198) target = $region28
        $region27: #{tpu_custom_call.1} parent=11 // pred_region
          _
        $region28: #{tpu_custom_call.1} parent=11 // pred_fallthru
          _
      $region12: #{tpu_custom_call.1} parent=5 // pred_fallthru
        _
      %p201 = scmp.lt.s32.totalorder %s18, 2
      // Predicated region
      $region29: #{tpu_custom_call.1} parent=5 // pred_check
        %p202 = pneg %p201
      $region30: #{tpu_custom_call.1} parent=5 // pred_check_branch
        %204 = sbr.rel (%p202) target = $region32
      $region31: #{tpu_custom_call.1} parent=5 // pred_region
        // Predicated region
        $region33: #{tpu_custom_call.1} parent=31 // pred_check
          %p205 = pneg %p38
        $region34: #{tpu_custom_call.1} parent=31 // pred_check_branch
          %207 = sbr.rel (%p205) target = $region36
        $region35: #{tpu_custom_call.1} parent=31 // pred_region
          %s208 = sand.u32 %s28, 1
          %s209 = scalar_lea.sflag [#allocation3], %s208
          %s210 = sand.u32 %s28, 1
          %s211 = smul.addr %s210, 4
          %s212 = scalar_lea.vmem [#allocation2], %s211
          %s214 = ssub.s32 64, 64
          %215 = vsyncadd %s209, %s214
          %s216 = smul.addr %s18, 64
          %s217 = scalar_lea.hbm %s0, %s216
          %s219 = sshll.u32 %s212, 4
          %s220 = int_to_ptr.vmem [resolvable:$true] %s219
          %222 = dma.hbm_to_vmem [thread:$0]  %s217, 64, %s220, %s209
        $region36: #{tpu_custom_call.1} parent=31 // pred_fallthru
          _
      $region32: #{tpu_custom_call.1} parent=5 // pred_fallthru
        _
      %p223 = scmp.le.s32.totalorder 1, %s18
      %p224 = scmp.lt.s32.totalorder %s18, 3
      %p225 = pnand %p223, %p224
      %p226 = pneg %p225
      // Predicated region
      $region37: #{tpu_custom_call.1} parent=5 // pred_check
        _
      $region38: #{tpu_custom_call.1} parent=5 // pred_check_branch
        %228 = sbr.rel (%p225) target = $region40
      $region39: #{tpu_custom_call.1} parent=5 // pred_region
        %s229 = ssub.s32 %s18, 1
        %s230 = sand.u32 %s31, 1
        %s231 = scalar_lea.sflag [#allocation3], %s230
        %s232 = sand.u32 %s31, 1
        %s233 = smul.addr %s232, 4
        %s234 = scalar_lea.vmem [#allocation2], %s233
        // Predicated region
        $region41: #{tpu_custom_call.1} parent=39 // pred_check
          %p235 = pneg %p44
        $region42: #{tpu_custom_call.1} parent=39 // pred_check_branch
          %237 = sbr.rel (%p235) target = $region44
        $region43: #{tpu_custom_call.1} parent=39 // pred_region
          %238 = dma.done %s231, 64
        $region44: #{tpu_custom_call.1} parent=39 // pred_fallthru
          _
        // Predicated region
        $region45: #{tpu_custom_call.1} parent=39 // pred_check
          %p239 = pneg %p65
        $region46: #{tpu_custom_call.1} parent=39 // pred_check_branch
          %241 = sbr.rel (%p239) target = $region48
        $region47: #{tpu_custom_call.1} parent=39 // pred_region
          %242 = dma.done [#allocation6], 512
        $region48: #{tpu_custom_call.1} parent=39 // pred_fallthru
          _
        // Predicated region
        $region49: #{tpu_custom_call.1} parent=39 // pred_check
          %p243 = pneg %p107
        $region50: #{tpu_custom_call.1} parent=39 // pred_check_branch
          %245 = sbr.rel (%p243) target = $region52
        $region51: #{tpu_custom_call.1} parent=39 // pred_region
          %246 = dma.done [#allocation6], 256
        $region52: #{tpu_custom_call.1} parent=39 // pred_fallthru
          _
        %s247 = sand.u32 %s31, 1
        %s248 = scalar_lea.sflag [#allocation3], %s247
        %s249 = sand.u32 %s31, 1
        %s250 = smul.addr %s249, 4
        %s251 = scalar_lea.vmem [#allocation2], %s250
        %p252 = pneg %p44
        %p253 = pneg %p41
        %p254 = pneg %p65
        %p255 = pneg %p62
        %p256 = pneg %p86
        %p257 = pneg %p83
        %p258 = pneg %p107
        %p259 = pneg %p104
        %p260 = pneg %p128
        %p261 = pneg %p125
        %p262 = pneg %p154
        %p263 = pneg %p151
        %s264 = sand.u32 %s141, 1
        %s265 = scalar_lea.sflag [#allocation4], %s264
        %s266 = sand.u32 %s141, 1
        %s267 = smul.addr %s266, 8
        %s268 = scalar_lea.vmem [#allocation8], %s267
        %v270 = vld [vmem:[%s234] sm:$0xf]
        %v271 = vld [vmem:[#allocation5] sm:$0xff]
        %v272 = vld [vmem:[#allocation5 + $0x8] sm:$0xff]
        %v273 = vld [vmem:[#allocation5 + $0x10] sm:$0xff]
        %v274 = vld [vmem:[#allocation5 + $0x18] sm:$0xff]
        %v275 = vld [vmem:[%s2] sm:$0x3]
        %v277 = vlaneseq
        %v278 = vshrl.u32 %v277, 7
        %v279 = vsub.s32 0, %v278
        %v280 = vrot.slane %v275, %v279
        %v281 = vlaneseq
        %v282 = vshrl.u32 %v281, 7
        %v283 = vsub.s32 1, %v282
        %v284 = vrot.slane %v275, %v283
        %v291 = vunpack.c.l.b16 %v271
        %v292 = vunpack.c.h.b16 %v271
        %v293 = vunpack.c.l.b16 %v272
        %v294 = vunpack.c.h.b16 %v272
        %v295 = vunpack.c.l.b16 %v273
        %v296 = vunpack.c.h.b16 %v273
        %v297 = vunpack.c.l.b16 %v274
        %v298 = vunpack.c.h.b16 %v274
        %v299 = vpack.c.b16 %v293, %v291
        %v300 = vpack.c.b16 %v294, %v292
        %v301 = vpack.c.b16 %v297, %v295
        %v302 = vpack.c.b16 %v298, %v296
        %vm307 = vcmask 261120
        %v309 = vsel %vm307, %v270, 0
        %311 = vmatprep.subr.bf16.mxu0 0
        %312 = vmatpush1.bf16.msra.mxu0 0
        %313 = vmatprep.subr.bf16.mxu0 0
        %314 = vmatpush1.bf16.msra.mxu0 0
        %315 = vmatprep.subr.bf16.mxu0 0
        %316 = vmatpush1.bf16.msra.mxu0 0
        %317 = vmatprep.subr.bf16.mxu0 0
        %318 = vmatpush1.bf16.msra.mxu0 0
        %319 = vmatprep.subr.bf16.mxu0 0
        %320 = vmatpush1.bf16.msra.mxu0 0
        %321 = vmatprep.subr.bf16.mxu0 0
        %322 = vmatpush1.bf16.msra.mxu0 0
        %323 = vmatprep.subr.bf16.mxu0 %v302
        %324 = vmatpush1.bf16.msra.mxu0 %v301
        %325 = vmatprep.subr.bf16.mxu0 %v300
        %326 = vmatpush1.bf16.msra.mxu0 %v299
        %327 = vmatprep.subr.bf16.mxu0 0
        %328 = vmatpush2.bf16.msra.mxu0 0
        %329 = vmatprep.subr.bf16.mxu0 0
        %330 = vmatpush2.bf16.msra.mxu0 0
        %331 = vmatprep.subr.bf16.mxu0 0
        %332 = vmatpush2.bf16.msra.mxu0 0
        %333 = vmatprep.subr.bf16.mxu0 0
        %334 = vmatpush2.bf16.msra.mxu0 0
        %335 = vmatprep.subr.bf16.mxu0 0
        %336 = vmatpush2.bf16.msra.mxu0 0
        %337 = vmatprep.subr.bf16.mxu0 0
        %338 = vmatpush2.bf16.msra.mxu0 0
        %339 = vmatprep.subr.bf16.mxu0 0
        %340 = vmatpush2.bf16.msra.mxu0 0
        %341 = vmatprep.subr.bf16.mxu0 0
        %342 = vmatpush2.bf16.msra.mxu0 0
        %343 = vmatprep.mubr.bf16.mxu0 0
        %344 = vmatmul.mubr.bf16.gmra.mxu0 %v309
        %v345 = vpop.f32.mrf.mxu0
        %v346 = vadd.f32 %v280, %v345
        %v347 = vpop.f32.mrf.mxu0
        %v348 = vadd.f32 %v284, %v347
        %v349 = vpop.f32.mrf.mxu0
        %v350 = vpop.f32.mrf.mxu0
        %351 = vdwg.mxu0
        %352 = vmax.xlane.f32.xlu0 %v346
        %v353 = vpop.xlane.xlu0 %352
        %v354 = vsub.f32 %v346, %v353
        %v355 = vmul.f32 %v354, 1.442695
        %v356 = vpow.pop %v355
        %357 = vadd.xlane.f32.xlu0 %v356
        %v358 = vpop.xlane.xlu0 %357
        %v359 = vrcp.pop %v358
        %v360 = vmul.f32 %v356, %v359
        %v361 = vtanh.pop %v348
        %v362 = vpack.c.bf16 %v361, %v361
        %v363 = vld [vmem:[#allocation7] sm:$0xf]
        %v364 = vld [vmem:[#allocation7 + $0x4] sm:$0xf]
        %v365 = vld [vmem:[#allocation7 + $0x8] sm:$0xf]
        %v366 = vld [vmem:[#allocation7 + $0xc] sm:$0xf]
        %v367 = vld [vmem:[%s4] sm:$0x1]
        %v369 = vlaneseq
        %v370 = vshrl.u32 %v369, 7
        %v371 = vsub.s32 0, %v370
        %v372 = vrot.slane %v367, %v371
        %v378 = vunpack.c.l.b16 %v363
        %v379 = vunpack.c.l.b16 %v364
        %v380 = vunpack.c.l.b16 %v365
        %v381 = vunpack.c.l.b16 %v366
        %v382 = vpack.c.b16 %v379, %v378
        %v383 = vpack.c.b16 %v381, %v380
        %v387 = vsel %vm307, %v362, 0
        %389 = vmatprep.subr.bf16.mxu0 0
        %390 = vmatpush1.bf16.msra.mxu0 0
        %391 = vmatprep.subr.bf16.mxu0 0
        %392 = vmatpush1.bf16.msra.mxu0 0
        %393 = vmatprep.subr.bf16.mxu0 0
        %394 = vmatpush1.bf16.msra.mxu0 0
        %395 = vmatprep.subr.bf16.mxu0 0
        %396 = vmatpush1.bf16.msra.mxu0 0
        %397 = vmatprep.subr.bf16.mxu0 0
        %398 = vmatpush1.bf16.msra.mxu0 0
        %399 = vmatprep.subr.bf16.mxu0 0
        %400 = vmatpush1.bf16.msra.mxu0 0
        %401 = vmatprep.subr.bf16.mxu0 0
        %402 = vmatpush1.bf16.msra.mxu0 %v383
        %403 = vmatprep.subr.bf16.mxu0 0
        %404 = vmatpush1.bf16.msra.mxu0 %v382
        %405 = vmatprep.subr.bf16.mxu0 0
        %406 = vmatpush2.bf16.msra.mxu0 0
        %407 = vmatprep.subr.bf16.mxu0 0
        %408 = vmatpush2.bf16.msra.mxu0 0
        %409 = vmatprep.subr.bf16.mxu0 0
        %410 = vmatpush2.bf16.msra.mxu0 0
        %411 = vmatprep.subr.bf16.mxu0 0
        %412 = vmatpush2.bf16.msra.mxu0 0
        %413 = vmatprep.subr.bf16.mxu0 0
        %414 = vmatpush2.bf16.msra.mxu0 0
        %415 = vmatprep.subr.bf16.mxu0 0
        %416 = vmatpush2.bf16.msra.mxu0 0
        %417 = vmatprep.subr.bf16.mxu0 0
        %418 = vmatpush2.bf16.msra.mxu0 0
        %419 = vmatprep.subr.bf16.mxu0 0
        %420 = vmatpush2.bf16.msra.mxu0 0
        %421 = vmatprep.mubr.bf16.mxu0 0
        %422 = vmatmul.mubr.bf16.gmra.mxu0 %v387
        %v423 = vpop.f32.mrf.mxu0
        %v424 = vadd.f32 %v372, %v423
        %v425 = vpop.f32.mrf.mxu0
        %v426 = vpop.f32.mrf.mxu0
        %v427 = vpop.f32.mrf.mxu0
        %428 = vdwg.mxu0
        %429 = vmax.xlane.f32.xlu0 %v424
        %v430 = vpop.xlane.xlu0 %429
        %v431 = vsub.f32 %v424, %v430
        %v432 = vmul.f32 %v431, 1.442695
        %v433 = vpow.pop %v432
        %434 = vadd.xlane.f32.xlu0 %v433
        %v435 = vpop.xlane.xlu0 %434
        %v436 = vrcp.pop %v435
        %v437 = vmul.f32 %v360, %v436
        %439 = vset.pattern.permute.xlu0 0
        %440 = vperm.xlu0 %439, %v437
        %v441 = vpop.permute.xlu0 %440
        %v443 = vmul.f32 %v441, %v433
        %445 = vrot.lane.b32.xlu0 %v362, 96
        %v446 = vpop.permute.xlu0 %445
        %v448 = vsel %vm307, %v446, 0
        %450 = vmatprep.subr.bf16.mxu0 0
        %451 = vmatpush1.bf16.msra.mxu0 0
        %452 = vmatprep.subr.bf16.mxu0 0
        %453 = vmatpush1.bf16.msra.mxu0 0
        %454 = vmatprep.subr.bf16.mxu0 0
        %455 = vmatpush1.bf16.msra.mxu0 0
        %456 = vmatprep.subr.bf16.mxu0 0
        %457 = vmatpush1.bf16.msra.mxu0 0
        %458 = vmatprep.subr.bf16.mxu0 0
        %459 = vmatpush1.bf16.msra.mxu0 0
        %460 = vmatprep.subr.bf16.mxu0 0
        %461 = vmatpush1.bf16.msra.mxu0 0
        %462 = vmatprep.subr.bf16.mxu0 0
        %463 = vmatpush1.bf16.msra.mxu0 %v383
        %464 = vmatprep.subr.bf16.mxu0 0
        %465 = vmatpush1.bf16.msra.mxu0 %v382
        %466 = vmatprep.subr.bf16.mxu0 0
        %467 = vmatpush2.bf16.msra.mxu0 0
        %468 = vmatprep.subr.bf16.mxu0 0
        %469 = vmatpush2.bf16.msra.mxu0 0
        %470 = vmatprep.subr.bf16.mxu0 0
        %471 = vmatpush2.bf16.msra.mxu0 0
        %472 = vmatprep.subr.bf16.mxu0 0
        %473 = vmatpush2.bf16.msra.mxu0 0
        %474 = vmatprep.subr.bf16.mxu0 0
        %475 = vmatpush2.bf16.msra.mxu0 0
        %476 = vmatprep.subr.bf16.mxu0 0
        %477 = vmatpush2.bf16.msra.mxu0 0
        %478 = vmatprep.subr.bf16.mxu0 0
        %479 = vmatpush2.bf16.msra.mxu0 0
        %480 = vmatprep.subr.bf16.mxu0 0
        %481 = vmatpush2.bf16.msra.mxu0 0
        %482 = vmatprep.mubr.bf16.mxu0 0
        %483 = vmatmul.mubr.bf16.gmra.mxu0 %v448
        %v484 = vpop.f32.mrf.mxu0
        %v485 = vadd.f32 %v372, %v484
        %v486 = vpop.f32.mrf.mxu0
        %v487 = vpop.f32.mrf.mxu0
        %v488 = vpop.f32.mrf.mxu0
        %489 = vdwg.mxu0
        %490 = vmax.xlane.f32.xlu0 %v485
        %v491 = vpop.xlane.xlu0 %490
        %v492 = vsub.f32 %v485, %v491
        %v493 = vmul.f32 %v492, 1.442695
        %v494 = vpow.pop %v493
        %495 = vadd.xlane.f32.xlu0 %v494
        %v496 = vpop.xlane.xlu0 %495
        %v497 = vrcp.pop %v496
        %v498 = vmul.f32 %v360, %v497
        %500 = vset.pattern.permute.xlu0 1
        %501 = vperm.xlu0 %500, %v498
        %v502 = vpop.permute.xlu0 %501
        %v504 = vmul.f32 %v502, %v494
        %v505 = vadd.f32 %v443, %v504
        %506 = vrot.lane.b32.xlu0 %v362, 64
        %v507 = vpop.permute.xlu0 %506
        %v509 = vsel %vm307, %v507, 0
        %511 = vmatprep.subr.bf16.mxu0 0
        %512 = vmatpush1.bf16.msra.mxu0 0
        %513 = vmatprep.subr.bf16.mxu0 0
        %514 = vmatpush1.bf16.msra.mxu0 0
        %515 = vmatprep.subr.bf16.mxu0 0
        %516 = vmatpush1.bf16.msra.mxu0 0
        %517 = vmatprep.subr.bf16.mxu0 0
        %518 = vmatpush1.bf16.msra.mxu0 0
        %519 = vmatprep.subr.bf16.mxu0 0
        %520 = vmatpush1.bf16.msra.mxu0 0
        %521 = vmatprep.subr.bf16.mxu0 0
        %522 = vmatpush1.bf16.msra.mxu0 0
        %523 = vmatprep.subr.bf16.mxu0 0
        %524 = vmatpush1.bf16.msra.mxu0 %v383
        %525 = vmatprep.subr.bf16.mxu0 0
        %526 = vmatpush1.bf16.msra.mxu0 %v382
        %527 = vmatprep.subr.bf16.mxu0 0
        %528 = vmatpush2.bf16.msra.mxu0 0
        %529 = vmatprep.subr.bf16.mxu0 0
        %530 = vmatpush2.bf16.msra.mxu0 0
        %531 = vmatprep.subr.bf16.mxu0 0
        %532 = vmatpush2.bf16.msra.mxu0 0
        %533 = vmatprep.subr.bf16.mxu0 0
        %534 = vmatpush2.bf16.msra.mxu0 0
        %535 = vmatprep.subr.bf16.mxu0 0
        %536 = vmatpush2.bf16.msra.mxu0 0
        %537 = vmatprep.subr.bf16.mxu0 0
        %538 = vmatpush2.bf16.msra.mxu0 0
        %539 = vmatprep.subr.bf16.mxu0 0
        %540 = vmatpush2.bf16.msra.mxu0 0
        %541 = vmatprep.subr.bf16.mxu0 0
        %542 = vmatpush2.bf16.msra.mxu0 0
        %543 = vmatprep.mubr.bf16.mxu0 0
        %544 = vmatmul.mubr.bf16.gmra.mxu0 %v509
        %v545 = vpop.f32.mrf.mxu0
        %v546 = vadd.f32 %v372, %v545
        %v547 = vpop.f32.mrf.mxu0
        %v548 = vpop.f32.mrf.mxu0
        %v549 = vpop.f32.mrf.mxu0
        %550 = vdwg.mxu0
        %551 = vmax.xlane.f32.xlu0 %v546
        %v552 = vpop.xlane.xlu0 %551
        %v553 = vsub.f32 %v546, %v552
        %v554 = vmul.f32 %v553, 1.442695
        %v555 = vpow.pop %v554
        %556 = vadd.xlane.f32.xlu0 %v555
        %v557 = vpop.xlane.xlu0 %556
        %v558 = vrcp.pop %v557
        %v559 = vmul.f32 %v360, %v558
        %561 = vset.pattern.permute.xlu0 2
        %562 = vperm.xlu0 %561, %v559
        %v563 = vpop.permute.xlu0 %562
        %v565 = vmul.f32 %v563, %v555
        %v566 = vadd.f32 %v505, %v565
        %567 = vrot.lane.b32.xlu0 %v362, 32
        %v568 = vpop.permute.xlu0 %567
        %v570 = vsel %vm307, %v568, 0
        %572 = vmatprep.subr.bf16.mxu0 0
        %573 = vmatpush1.bf16.msra.mxu0 0
        %574 = vmatprep.subr.bf16.mxu0 0
        %575 = vmatpush1.bf16.msra.mxu0 0
        %576 = vmatprep.subr.bf16.mxu0 0
        %577 = vmatpush1.bf16.msra.mxu0 0
        %578 = vmatprep.subr.bf16.mxu0 0
        %579 = vmatpush1.bf16.msra.mxu0 0
        %580 = vmatprep.subr.bf16.mxu0 0
        %581 = vmatpush1.bf16.msra.mxu0 0
        %582 = vmatprep.subr.bf16.mxu0 0
        %583 = vmatpush1.bf16.msra.mxu0 0
        %584 = vmatprep.subr.bf16.mxu0 0
        %585 = vmatpush1.bf16.msra.mxu0 %v383
        %586 = vmatprep.subr.bf16.mxu0 0
        %587 = vmatpush1.bf16.msra.mxu0 %v382
        %588 = vmatprep.subr.bf16.mxu0 0
        %589 = vmatpush2.bf16.msra.mxu0 0
        %590 = vmatprep.subr.bf16.mxu0 0
        %591 = vmatpush2.bf16.msra.mxu0 0
        %592 = vmatprep.subr.bf16.mxu0 0
        %593 = vmatpush2.bf16.msra.mxu0 0
        %594 = vmatprep.subr.bf16.mxu0 0
        %595 = vmatpush2.bf16.msra.mxu0 0
        %596 = vmatprep.subr.bf16.mxu0 0
        %597 = vmatpush2.bf16.msra.mxu0 0
        %598 = vmatprep.subr.bf16.mxu0 0
        %599 = vmatpush2.bf16.msra.mxu0 0
        %600 = vmatprep.subr.bf16.mxu0 0
        %601 = vmatpush2.bf16.msra.mxu0 0
        %602 = vmatprep.subr.bf16.mxu0 0
        %603 = vmatpush2.bf16.msra.mxu0 0
        %604 = vmatprep.mubr.bf16.mxu0 0
        %605 = vmatmul.mubr.bf16.gmra.mxu0 %v570
        %v606 = vpop.f32.mrf.mxu0
        %v607 = vadd.f32 %v372, %v606
        %v608 = vpop.f32.mrf.mxu0
        %v609 = vpop.f32.mrf.mxu0
        %v610 = vpop.f32.mrf.mxu0
        %611 = vdwg.mxu0
        %612 = vmax.xlane.f32.xlu0 %v607
        %v613 = vpop.xlane.xlu0 %612
        %v614 = vsub.f32 %v607, %v613
        %v615 = vmul.f32 %v614, 1.442695
        %v616 = vpow.pop %v615
        %617 = vadd.xlane.f32.xlu0 %v616
        %v618 = vpop.xlane.xlu0 %617
        %v619 = vrcp.pop %v618
        %v620 = vmul.f32 %v360, %v619
        %622 = vset.pattern.permute.xlu0 3
        %623 = vperm.xlu0 %622, %v620
        %v624 = vpop.permute.xlu0 %623
        %v626 = vmul.f32 %v624, %v616
        %v627 = vadd.f32 %v566, %v626
        %628 = vst [vmem:[%s268] sm:$0xff] %v627
        %s629 = sand.u32 %s141, 1
        %s630 = scalar_lea.sflag [#allocation4], %s629
        %s631 = sand.u32 %s141, 1
        %s632 = smul.addr %s631, 8
        %s633 = scalar_lea.vmem [#allocation8], %s632
        // Predicated region
        $region53: #{tpu_custom_call.1} parent=39 // pred_check
          %p634 = pneg %p151
        $region54: #{tpu_custom_call.1} parent=39 // pred_check_branch
          %636 = sbr.rel (%p634) target = $region56
        $region55: #{tpu_custom_call.1} parent=39 // pred_region
          %s638 = ssub.s32 128, 128
          %639 = vsyncadd %s630, %s638
          %s640 = smul.addr %s23, 128
          %s641 = scalar_lea.hbm %s5, %s640
          %s643 = sshll.u32 %s633, 4
          %s644 = int_to_ptr.vmem [resolvable:$true] %s643
          %646 = dma.vmem_to_hbm [thread:$0]  %s644, 128, %s641, %s630
        $region56: #{tpu_custom_call.1} parent=39 // pred_fallthru
          _
      $region40: #{tpu_custom_call.1} parent=5 // pred_fallthru
        _
      %p647 = scmp.le.s32.totalorder 2, %s18
      // Predicated region
      $region57: #{tpu_custom_call.1} parent=5 // pred_check
        %p648 = pneg %p647
      $region58: #{tpu_custom_call.1} parent=5 // pred_check_branch
        %650 = sbr.rel (%p648) target = $region60
      $region59: #{tpu_custom_call.1} parent=5 // pred_region
        %s651 = ssub.s32 %s18, 2
        // Predicated region
        $region61: #{tpu_custom_call.1} parent=59 // pred_check
          %p652 = pneg %p157
        $region62: #{tpu_custom_call.1} parent=59 // pred_check_branch
          %654 = sbr.rel (%p652) target = $region64
        $region63: #{tpu_custom_call.1} parent=59 // pred_region
          %s655 = sand.u32 %s142, 1
          %s656 = scalar_lea.sflag [#allocation4], %s655
          %s657 = sand.u32 %s142, 1
          %s658 = smul.addr %s657, 8
          %s659 = scalar_lea.vmem [#allocation8], %s658
          %660 = dma.done %s656, 128
        $region64: #{tpu_custom_call.1} parent=59 // pred_fallthru
          _
      $region60: #{tpu_custom_call.1} parent=5 // pred_fallthru
        _
    $region6: #{tpu_custom_call.1} parent=1 // loop_footer
      %s22 = sadd.s32 1, %s18
    $region7: #{tpu_custom_call.1} parent=1 // loop_footer_branch
      %17 = sbr.rel target = $region3
    $region8: #{tpu_custom_call.1} parent=1 // loop_exit
      _
    %661 = vsyncpa [#allocation3], 1
    %s662 = scalar_lea.sflag [#allocation3], 1
    %663 = vsyncpa %s662, 1
    %664 = vsyncpa [#allocation6], 1
    %665 = vsyncpa [#allocation4], 1
    %s666 = scalar_lea.sflag [#allocation4], 1
    %667 = vsyncpa %s666, 1

// kernel: tpu_custom_call.1
$region0: #{tpu_custom_call.1}
  #allocation0 [shape = 'u32[]', space=smem, size = 0x4, offset = 0x4, fixed_abs, tag = 'smem constant byte address 0x4 - core index']
  #allocation1 [shape = 'u32[144,128]{1,0:T(1,128)}', space=vmem, size = 0x12000, scoped, tag = 'internal scratch']
  %s0 = inlined_call_operand.hbm [shape: bf16[16,32], index: 0, kind: input, shape index: {}]
  %s1 = inlined_call_operand.hbm [shape: bf16[32,256], index: 1, kind: input, shape index: {}]
  %s2 = inlined_call_operand.vmem [shape: f32[1,256], index: 2, kind: input, shape index: {}]
  %s3 = inlined_call_operand.hbm [shape: bf16[32,128], index: 3, kind: input, shape index: {}]
  %s4 = inlined_call_operand.vmem [shape: f32[1,128], index: 4, kind: input, shape index: {}]
  %s5 = inlined_call_operand.hbm [shape: f32[16,128], index: 5, kind: output, shape index: {}]
  %s6 = sld [smem:[#allocation0]]
  $region65: #{tpu_custom_call.1} parent=0
    _
  %s8 = ssub.s32 1, %s6
  %s9 = scalar_select 0, %s8, %s6
  $region1: #{tpu_custom_call.1} parent=0
    #allocation2 [shape = 'u8[4096]{0}', space=vmem, size = 0x1000, scoped, tag = 'input window, operand 0']
    #allocation3 [shape = 's32[2]{0}', space=sflag, size = 0x8, scoped, tag = 'scoped memory for tpu_custom_call.1']
    #allocation4 [shape = 's32[2]{0}', space=sflag, size = 0x8, scoped, tag = 'scoped memory for tpu_custom_call.1']
    #allocation5 [shape = 'u8[16384]{0}', space=vmem, size = 0x4000, scoped, tag = 'input window, operand 1, single buffered']
    #allocation6 [shape = 's32[1]{0}', space=sflag, size = 0x4, scoped, tag = 'scoped memory for tpu_custom_call.1']
    #allocation7 [shape = 'u8[8192]{0}', space=vmem, size = 0x2000, scoped, tag = 'input window, operand 3, single buffered']
    #allocation8 [shape = 'u8[8192]{0}', space=vmem, size = 0x2000, scoped, tag = 'output window, operand 0']
    %10 = vsyncpa [#allocation3], 0
    %s11 = scalar_lea.sflag [#allocation3], 1
    %12 = vsyncpa %s11, 0
    %13 = vsyncpa [#allocation6], 0
    %14 = vsyncpa [#allocation4], 0
    %s15 = scalar_lea.sflag [#allocation4], 1
    %16 = vsyncpa %s15, 0
    loop: start=0, step=1, limit=4
    $region2: #{tpu_custom_call.1} parent=1 // loop_pre_header
      _
    $region3: #{tpu_custom_call.1} parent=1 // loop_header
      %s18 = sphi 0, %s22
      %p19 = scmp.ge.s32.totalorder %s18, 4
      %s28 = sphi 0, %s30
      %s31 = sphi 0, %s28
      %s32 = sphi 0, %s31
      %s48 = sphi 0, %s32
      %s52 = sphi 0, %s52
      %s54 = sphi 0, %s52
      %s55 = sphi 0, %s54
      %s69 = sphi 0, %s55
      %s73 = sphi 0, %s73
      %s75 = sphi 0, %s73
      %s76 = sphi 0, %s75
      %s90 = sphi 0, %s76
      %s94 = sphi 0, %s94
      %s96 = sphi 0, %s94
      %s97 = sphi 0, %s96
      %s111 = sphi 0, %s97
      %s115 = sphi 0, %s115
      %s117 = sphi 0, %s115
      %s118 = sphi 0, %s117
      %s132 = sphi 0, %s118
      %s138 = sphi 0, %s140
      %s141 = sphi 0, %s138
      %s142 = sphi 0, %s141
      %s158 = sphi 0, %s142
    $region4: #{tpu_custom_call.1} parent=1 // loop_header_branch
      %21 = sbr.rel (%p19) target = $region8
    $region5: #{tpu_custom_call.1} parent=1 // loop_body
      %s23 = ssub.s32 %s18, 1
      %s24 = ssub.s32 %s18, 2
      %s25 = sadd.s32 %s18, 1
      %s26 = ssub.s32 %s18, %s25
      %p27 = scmp.eq.s32.totalorder %s26, 0
      %s29 = sadd.s32 %s28, 1
      %s30 = scalar_select %p27, %s28, %s29
      %p33 = pneg %p27
      %p34 = scmp.eq.s32.totalorder %s18, 1
      %p35 = por %p33, %p34
      %p36 = scmp.ne.s32.totalorder %s28, %s31
      %p37 = scmp.eq.s32.totalorder %s18, 0
      %p38 = por %p36, %p37
      %p39 = scmp.ne.s32.totalorder %s28, %s31
      %p40 = scmp.eq.s32.totalorder %s23, 1
      %p41 = por %p39, %p40
      %p42 = scmp.ne.s32.totalorder %s31, %s32
      %p43 = scmp.eq.s32.totalorder %s23, 0
      %p44 = por %p42, %p43
      %p45 = scmp.ne.s32.totalorder %s31, %s32
      %p46 = scmp.eq.s32.totalorder %s24, 1
      %p47 = por %p45, %p46
      %p49 = scmp.ne.s32.totalorder %s32, %s48
      %p50 = scmp.eq.s32.totalorder %s24, 0
      %p51 = por %p49, %p50
      %s53 = sadd.s32 %s52, 1
      %p56 = scmp.eq.s32.totalorder %s18, 1
      %p57 = scmp.ne.s32.totalorder %s52, %s54
      %p58 = scmp.eq.s32.totalorder %s18, 0
      %p59 = por %p57, %p58
      %p60 = scmp.ne.s32.totalorder %s52, %s54
      %p61 = scmp.eq.s32.totalorder %s23, 1
      %p62 = por %p60, %p61
      %p63 = scmp.ne.s32.totalorder %s54, %s55
      %p64 = scmp.eq.s32.totalorder %s23, 0
      %p65 = por %p63, %p64
      %p66 = scmp.ne.s32.totalorder %s54, %s55
      %p67 = scmp.eq.s32.totalorder %s24, 1
      %p68 = por %p66, %p67
      %p70 = scmp.ne.s32.totalorder %s55, %s69
      %p71 = scmp.eq.s32.totalorder %s24, 0
      %p72 = por %p70, %p71
      %s74 = sadd.s32 %s73, 1
      %p77 = scmp.eq.s32.totalorder %s18, 1
      %p78 = scmp.ne.s32.totalorder %s73, %s75
      %p79 = scmp.eq.s32.totalorder %s18, 0
      %p80 = por %p78, %p79
      %p81 = scmp.ne.s32.totalorder %s73, %s75
      %p82 = scmp.eq.s32.totalorder %s23, 1
      %p83 = por %p81, %p82
      %p84 = scmp.ne.s32.totalorder %s75, %s76
      %p85 = scmp.eq.s32.totalorder %s23, 0
      %p86 = por %p84, %p85
      %p87 = scmp.ne.s32.totalorder %s75, %s76
      %p88 = scmp.eq.s32.totalorder %s24, 1
      %p89 = por %p87, %p88
      %p91 = scmp.ne.s32.totalorder %s76, %s90
      %p92 = scmp.eq.s32.totalorder %s24, 0
      %p93 = por %p91, %p92
      %s95 = sadd.s32 %s94, 1
      %p98 = scmp.eq.s32.totalorder %s18, 1
      %p99 = scmp.ne.s32.totalorder %s94, %s96
      %p100 = scmp.eq.s32.totalorder %s18, 0
      %p101 = por %p99, %p100
      %p102 = scmp.ne.s32.totalorder %s94, %s96
      %p103 = scmp.eq.s32.totalorder %s23, 1
      %p104 = por %p102, %p103
      %p105 = scmp.ne.s32.totalorder %s96, %s97
      %p106 = scmp.eq.s32.totalorder %s23, 0
      %p107 = por %p105, %p106
      %p108 = scmp.ne.s32.totalorder %s96, %s97
      %p109 = scmp.eq.s32.totalorder %s24, 1
      %p110 = por %p108, %p109
      %p112 = scmp.ne.s32.totalorder %s97, %s111
      %p113 = scmp.eq.s32.totalorder %s24, 0
      %p114 = por %p112, %p113
      %s116 = sadd.s32 %s115, 1
      %p119 = scmp.eq.s32.totalorder %s18, 1
      %p120 = scmp.ne.s32.totalorder %s115, %s117
      %p121 = scmp.eq.s32.totalorder %s18, 0
      %p122 = por %p120, %p121
      %p123 = scmp.ne.s32.totalorder %s115, %s117
      %p124 = scmp.eq.s32.totalorder %s23, 1
      %p125 = por %p123, %p124
      %p126 = scmp.ne.s32.totalorder %s117, %s118
      %p127 = scmp.eq.s32.totalorder %s23, 0
      %p128 = por %p126, %p127
      %p129 = scmp.ne.s32.totalorder %s117, %s118
      %p130 = scmp.eq.s32.totalorder %s24, 1
      %p131 = por %p129, %p130
      %p133 = scmp.ne.s32.totalorder %s118, %s132
      %p134 = scmp.eq.s32.totalorder %s24, 0
      %p135 = por %p133, %p134
      %s136 = ssub.s32 %s18, %s25
      %p137 = scmp.eq.s32.totalorder %s136, 0
      %s139 = sadd.s32 %s138, 1
      %s140 = scalar_select %p137, %s138, %s139
      %p143 = pneg %p137
      %p144 = scmp.eq.s32.totalorder %s18, 1
      %p145 = por %p143, %p144
      %p146 = scmp.ne.s32.totalorder %s138, %s141
      %p147 = scmp.eq.s32.totalorder %s18, 0
      %p148 = por %p146, %p147
      %p149 = scmp.ne.s32.totalorder %s138, %s141
      %p150 = scmp.eq.s32.totalorder %s23, 1
      %p151 = por %p149, %p150
      %p152 = scmp.ne.s32.totalorder %s141, %s142
      %p153 = scmp.eq.s32.totalorder %s23, 0
      %p154 = por %p152, %p153
      %p155 = scmp.ne.s32.totalorder %s141, %s142
      %p156 = scmp.eq.s32.totalorder %s24, 1
      %p157 = por %p155, %p156
      %p159 = scmp.ne.s32.totalorder %s142, %s158
      %p160 = scmp.eq.s32.totalorder %s24, 0
      %p161 = por %p159, %p160
      %p162 = scmp.le.s32.totalorder 1, %s18
      %p163 = scmp.lt.s32.totalorder %s18, 3
      %p164 = pnand %p162, %p163
      %p165 = pneg %p164
      // Predicated region
      $region9: #{tpu_custom_call.1} parent=5 // pred_check
        _
      $region10: #{tpu_custom_call.1} parent=5 // pred_check_branch
        %167 = sbr.rel (%p164) target = $region12
      $region11: #{tpu_custom_call.1} parent=5 // pred_region
        %s168 = ssub.s32 %s18, 1
        // Predicated region
        $region13: #{tpu_custom_call.1} parent=11 // pred_check
          %p169 = pneg %p65
        $region14: #{tpu_custom_call.1} parent=11 // pred_check_branch
          %171 = sbr.rel (%p169) target = $region16
        $region15: #{tpu_custom_call.1} parent=11 // pred_region
          %s173 = ssub.s32 512, 512
          %174 = vsyncadd [#allocation6], %s173
          %s175 = sshll.u32 [#allocation5], 4
          %s176 = int_to_ptr.vmem [resolvable:$true] %s175
          %181 = dma.hbm_to_vmem [thread:$0]  %s1, 512, %s176, [#allocation6], 128, 128, 8
        $region16: #{tpu_custom_call.1} parent=11 // pred_fallthru
          _
        // Predicated region
        $region17: #{tpu_custom_call.1} parent=11 // pred_check
          %p182 = pneg %p86
        $region18: #{tpu_custom_call.1} parent=11 // pred_check_branch
          %184 = sbr.rel (%p182) target = $region20
        $region19: #{tpu_custom_call.1} parent=11 // pred_region
          _
        $region20: #{tpu_custom_call.1} parent=11 // pred_fallthru
          _
        // Predicated region
        $region21: #{tpu_custom_call.1} parent=11 // pred_check
          %p185 = pneg %p107
        $region22: #{tpu_custom_call.1} parent=11 // pred_check_branch
          %187 = sbr.rel (%p185) target = $region24
        $region23: #{tpu_custom_call.1} parent=11 // pred_region
          %s189 = ssub.s32 256, 256
          %190 = vsyncadd [#allocation6], %s189
          %s191 = sshll.u32 [#allocation7], 4
          %s192 = int_to_ptr.vmem [resolvable:$true] %s191
          %197 = dma.hbm_to_vmem [thread:$0]  %s3, 256, %s192, [#allocation6], 64, 64, 4
        $region24: #{tpu_custom_call.1} parent=11 // pred_fallthru
          _
        // Predicated region
        $region25: #{tpu_custom_call.1} parent=11 // pred_check
          %p198 = pneg %p128
        $region26: #{tpu_custom_call.1} parent=11 // pred_check_branch
          %200 = sbr.rel (%p198) target = $region28
        $region27: #{tpu_custom_call.1} parent=11 // pred_region
          _
        $region28: #{tpu_custom_call.1} parent=11 // pred_fallthru
          _
      $region12: #{tpu_custom_call.1} parent=5 // pred_fallthru
        _
      %p201 = scmp.lt.s32.totalorder %s18, 2
      // Predicated region
      $region29: #{tpu_custom_call.1} parent=5 // pred_check
        %p202 = pneg %p201
      $region30: #{tpu_custom_call.1} parent=5 // pred_check_branch
        %204 = sbr.rel (%p202) target = $region32
      $region31: #{tpu_custom_call.1} parent=5 // pred_region
        // Predicated region
        $region33: #{tpu_custom_call.1} parent=31 // pred_check
          %p205 = pneg %p38
        $region34: #{tpu_custom_call.1} parent=31 // pred_check_branch
          %207 = sbr.rel (%p205) target = $region36
        $region35: #{tpu_custom_call.1} parent=31 // pred_region
          %s208 = sand.u32 %s28, 1
          %s209 = scalar_lea.sflag [#allocation3], %s208
          %s210 = sand.u32 %s28, 1
          %s211 = smul.addr %s210, 4
          %s212 = scalar_lea.vmem [#allocation2], %s211
          %s214 = ssub.s32 64, 64
          %215 = vsyncadd %s209, %s214
          %s216 = smul.addr %s18, 64
          %s217 = scalar_lea.hbm %s0, %s216
          %s219 = sshll.u32 %s212, 4
          %s220 = int_to_ptr.vmem [resolvable:$true] %s219
          %222 = dma.hbm_to_vmem [thread:$0]  %s217, 64, %s220, %s209
        $region36: #{tpu_custom_call.1} parent=31 // pred_fallthru
          _
      $region32: #{tpu_custom_call.1} parent=5 // pred_fallthru
        _
      %p223 = scmp.le.s32.totalorder 1, %s18
      %p224 = scmp.lt.s32.totalorder %s18, 3
      %p225 = pnand %p223, %p224
      %p226 = pneg %p225
      // Predicated region
      $region37: #{tpu_custom_call.1} parent=5 // pred_check
        _
      $region38: #{tpu_custom_call.1} parent=5 // pred_check_branch
        %228 = sbr.rel (%p225) target = $region40
      $region39: #{tpu_custom_call.1} parent=5 // pred_region
        %s229 = ssub.s32 %s18, 1
        %s230 = sand.u32 %s31, 1
        %s231 = scalar_lea.sflag [#allocation3], %s230
        %s232 = sand.u32 %s31, 1
        %s233 = smul.addr %s232, 4
        %s234 = scalar_lea.vmem [#allocation2], %s233
        // Predicated region
        $region41: #{tpu_custom_call.1} parent=39 // pred_check
          %p235 = pneg %p44
        $region42: #{tpu_custom_call.1} parent=39 // pred_check_branch
          %237 = sbr.rel (%p235) target = $region44
        $region43: #{tpu_custom_call.1} parent=39 // pred_region
          %238 = dma.done %s231, 64
        $region44: #{tpu_custom_call.1} parent=39 // pred_fallthru
          _
        // Predicated region
        $region45: #{tpu_custom_call.1} parent=39 // pred_check
          %p239 = pneg %p65
        $region46: #{tpu_custom_call.1} parent=39 // pred_check_branch
          %241 = sbr.rel (%p239) target = $region48
        $region47: #{tpu_custom_call.1} parent=39 // pred_region
          %242 = dma.done [#allocation6], 512
        $region48: #{tpu_custom_call.1} parent=39 // pred_fallthru
          _
        // Predicated region
        $region49: #{tpu_custom_call.1} parent=39 // pred_check
          %p243 = pneg %p107
        $region50: #{tpu_custom_call.1} parent=39 // pred_check_branch
          %245 = sbr.rel (%p243) target = $region52
        $region51: #{tpu_custom_call.1} parent=39 // pred_region
          %246 = dma.done [#allocation6], 256
        $region52: #{tpu_custom_call.1} parent=39 // pred_fallthru
          _
        %s247 = sand.u32 %s31, 1
        %s248 = scalar_lea.sflag [#allocation3], %s247
        %s249 = sand.u32 %s31, 1
        %s250 = smul.addr %s249, 4
        %s251 = scalar_lea.vmem [#allocation2], %s250
        %p252 = pneg %p44
        %p253 = pneg %p41
        %p254 = pneg %p65
        %p255 = pneg %p62
        %p256 = pneg %p86
        %p257 = pneg %p83
        %p258 = pneg %p107
        %p259 = pneg %p104
        %p260 = pneg %p128
        %p261 = pneg %p125
        %p262 = pneg %p154
        %p263 = pneg %p151
        %s264 = sand.u32 %s141, 1
        %s265 = scalar_lea.sflag [#allocation4], %s264
        %s266 = sand.u32 %s141, 1
        %s267 = smul.addr %s266, 8
        %s268 = scalar_lea.vmem [#allocation8], %s267
        %v270 = vld [vmem:[%s234] sm:$0xf]
        %v271 = vld [vmem:[#allocation5] sm:$0xff]
        %v272 = vld [vmem:[#allocation5 + $0x8] sm:$0xff]
        %v273 = vld [vmem:[#allocation5 + $0x10] sm:$0xff]
        %v274 = vld [vmem:[#allocation5 + $0x18] sm:$0xff]
        %v275 = vld [vmem:[%s2] sm:$0x3]
        %v277 = vlaneseq
        %v278 = vshrl.u32 %v277, 7
        %v279 = vsub.s32 0, %v278
        %v280 = vrot.slane %v275, %v279
        %v281 = vlaneseq
        %v282 = vshrl.u32 %v281, 7
        %v283 = vsub.s32 1, %v282
        %v284 = vrot.slane %v275, %v283
        %v291 = vunpack.c.l.b16 %v271
        %v292 = vunpack.c.h.b16 %v271
        %v293 = vunpack.c.l.b16 %v272
        %v294 = vunpack.c.h.b16 %v272
        %v295 = vunpack.c.l.b16 %v273
        %v296 = vunpack.c.h.b16 %v273
        %v297 = vunpack.c.l.b16 %v274
        %v298 = vunpack.c.h.b16 %v274
        %v299 = vpack.c.b16 %v293, %v291
        %v300 = vpack.c.b16 %v294, %v292
        %v301 = vpack.c.b16 %v297, %v295
        %v302 = vpack.c.b16 %v298, %v296
        %vm307 = vcmask 261120
        %v309 = vsel %vm307, %v270, 0
        %311 = vmatprep.subr.bf16.mxu0 0
        %312 = vmatpush1.bf16.msra.mxu0 0
        %313 = vmatprep.subr.bf16.mxu0 0
        %314 = vmatpush1.bf16.msra.mxu0 0
        %315 = vmatprep.subr.bf16.mxu0 0
        %316 = vmatpush1.bf16.msra.mxu0 0
        %317 = vmatprep.subr.bf16.mxu0 0
        %318 = vmatpush1.bf16.msra.mxu0 0
        %319 = vmatprep.subr.bf16.mxu0 0
        %320 = vmatpush1.bf16.msra.mxu0 0
        %321 = vmatprep.subr.bf16.mxu0 0
        %322 = vmatpush1.bf16.msra.mxu0 0
        %323 = vmatprep.subr.bf16.mxu0 %v302
        %324 = vmatpush1.bf16.msra.mxu0 %v301
        %325 = vmatprep.subr.bf16.mxu0 %v300
        %326 = vmatpush1.bf16.msra.mxu0 %v299
        %327 = vmatprep.subr.bf16.mxu0 0
        %328 = vmatpush2.bf16.msra.mxu0 0
        %329 = vmatprep.subr.bf16.mxu0 0
        %330 = vmatpush2.bf16.msra.mxu0 0
        %331 = vmatprep.subr.bf16.mxu0 0
        %332 = vmatpush2.bf16.msra.mxu0 0
        %333 = vmatprep.subr.bf16.mxu0 0
        %334 = vmatpush2.bf16.msra.mxu0 0
        %335 = vmatprep.subr.bf16.mxu0 0
        %336 = vmatpush2.bf16.msra.mxu0 0
        %337 = vmatprep.subr.bf16.mxu0 0
        %338 = vmatpush2.bf16.msra.mxu0 0
        %339 = vmatprep.subr.bf16.mxu0 0
        %340 = vmatpush2.bf16.msra.mxu0 0
        %341 = vmatprep.subr.bf16.mxu0 0
        %342 = vmatpush2.bf16.msra.mxu0 0
        %343 = vmatprep.mubr.bf16.mxu0 0
        %344 = vmatmul.mubr.bf16.gmra.mxu0 %v309
        %v345 = vpop.f32.mrf.mxu0
        %v346 = vadd.f32 %v280, %v345
        %v347 = vpop.f32.mrf.mxu0
        %v348 = vadd.f32 %v284, %v347
        %v349 = vpop.f32.mrf.mxu0
        %v350 = vpop.f32.mrf.mxu0
        %351 = vdwg.mxu0
        %352 = vmax.xlane.f32.xlu0 %v346
        %v353 = vpop.xlane.xlu0 %352
        %v354 = vsub.f32 %v346, %v353
        %v355 = vmul.f32 %v354, 1.442695
        %v356 = vpow.pop %v355
        %357 = vadd.xlane.f32.xlu0 %v356
        %v358 = vpop.xlane.xlu0 %357
        %v359 = vrcp.pop %v358
        %v360 = vmul.f32 %v356, %v359
        %v361 = vtanh.pop %v348
        %v362 = vpack.c.bf16 %v361, %v361
        %v363 = vld [vmem:[#allocation7] sm:$0xf]
        %v364 = vld [vmem:[#allocation7 + $0x4] sm:$0xf]
        %v365 = vld [vmem:[#allocation7 + $0x8] sm:$0xf]
        %v366 = vld [vmem:[#allocation7 + $0xc] sm:$0xf]
        %v367 = vld [vmem:[%s4] sm:$0x1]
        %v369 = vlaneseq
        %v370 = vshrl.u32 %v369, 7
        %v371 = vsub.s32 0, %v370
        %v372 = vrot.slane %v367, %v371
        %v378 = vunpack.c.l.b16 %v363
        %v379 = vunpack.c.l.b16 %v364
        %v380 = vunpack.c.l.b16 %v365
        %v381 = vunpack.c.l.b16 %v366
        %v382 = vpack.c.b16 %v379, %v378
        %v383 = vpack.c.b16 %v381, %v380
        %v387 = vsel %vm307, %v362, 0
        %389 = vmatprep.subr.bf16.mxu0 0
        %390 = vmatpush1.bf16.msra.mxu0 0
        %391 = vmatprep.subr.bf16.mxu0 0
        %392 = vmatpush1.bf16.msra.mxu0 0
        %393 = vmatprep.subr.bf16.mxu0 0
        %394 = vmatpush1.bf16.msra.mxu0 0
        %395 = vmatprep.subr.bf16.mxu0 0
        %396 = vmatpush1.bf16.msra.mxu0 0
        %397 = vmatprep.subr.bf16.mxu0 0
        %398 = vmatpush1.bf16.msra.mxu0 0
        %399 = vmatprep.subr.bf16.mxu0 0
        %400 = vmatpush1.bf16.msra.mxu0 0
        %401 = vmatprep.subr.bf16.mxu0 0
        %402 = vmatpush1.bf16.msra.mxu0 %v383
        %403 = vmatprep.subr.bf16.mxu0 0
        %404 = vmatpush1.bf16.msra.mxu0 %v382
        %405 = vmatprep.subr.bf16.mxu0 0
        %406 = vmatpush2.bf16.msra.mxu0 0
        %407 = vmatprep.subr.bf16.mxu0 0
        %408 = vmatpush2.bf16.msra.mxu0 0
        %409 = vmatprep.subr.bf16.mxu0 0
        %410 = vmatpush2.bf16.msra.mxu0 0
        %411 = vmatprep.subr.bf16.mxu0 0
        %412 = vmatpush2.bf16.msra.mxu0 0
        %413 = vmatprep.subr.bf16.mxu0 0
        %414 = vmatpush2.bf16.msra.mxu0 0
        %415 = vmatprep.subr.bf16.mxu0 0
        %416 = vmatpush2.bf16.msra.mxu0 0
        %417 = vmatprep.subr.bf16.mxu0 0
        %418 = vmatpush2.bf16.msra.mxu0 0
        %419 = vmatprep.subr.bf16.mxu0 0
        %420 = vmatpush2.bf16.msra.mxu0 0
        %421 = vmatprep.mubr.bf16.mxu0 0
        %422 = vmatmul.mubr.bf16.gmra.mxu0 %v387
        %v423 = vpop.f32.mrf.mxu0
        %v424 = vadd.f32 %v372, %v423
        %v425 = vpop.f32.mrf.mxu0
        %v426 = vpop.f32.mrf.mxu0
        %v427 = vpop.f32.mrf.mxu0
        %428 = vdwg.mxu0
        %429 = vmax.xlane.f32.xlu0 %v424
        %v430 = vpop.xlane.xlu0 %429
        %v431 = vsub.f32 %v424, %v430
        %v432 = vmul.f32 %v431, 1.442695
        %v433 = vpow.pop %v432
        %434 = vadd.xlane.f32.xlu0 %v433
        %v435 = vpop.xlane.xlu0 %434
        %v436 = vrcp.pop %v435
        %v437 = vmul.f32 %v360, %v436
        %439 = vset.pattern.permute.xlu0 0
        %440 = vperm.xlu0 %439, %v437
        %v441 = vpop.permute.xlu0 %440
        %v443 = vmul.f32 %v441, %v433
        %445 = vrot.lane.b32.xlu0 %v362, 96
        %v446 = vpop.permute.xlu0 %445
        %v448 = vsel %vm307, %v446, 0
        %450 = vmatprep.subr.bf16.mxu0 0
        %451 = vmatpush1.bf16.msra.mxu0 0
        %452 = vmatprep.subr.bf16.mxu0 0
        %453 = vmatpush1.bf16.msra.mxu0 0
        %454 = vmatprep.subr.bf16.mxu0 0
        %455 = vmatpush1.bf16.msra.mxu0 0
        %456 = vmatprep.subr.bf16.mxu0 0
        %457 = vmatpush1.bf16.msra.mxu0 0
        %458 = vmatprep.subr.bf16.mxu0 0
        %459 = vmatpush1.bf16.msra.mxu0 0
        %460 = vmatprep.subr.bf16.mxu0 0
        %461 = vmatpush1.bf16.msra.mxu0 0
        %462 = vmatprep.subr.bf16.mxu0 0
        %463 = vmatpush1.bf16.msra.mxu0 %v383
        %464 = vmatprep.subr.bf16.mxu0 0
        %465 = vmatpush1.bf16.msra.mxu0 %v382
        %466 = vmatprep.subr.bf16.mxu0 0
        %467 = vmatpush2.bf16.msra.mxu0 0
        %468 = vmatprep.subr.bf16.mxu0 0
        %469 = vmatpush2.bf16.msra.mxu0 0
        %470 = vmatprep.subr.bf16.mxu0 0
        %471 = vmatpush2.bf16.msra.mxu0 0
        %472 = vmatprep.subr.bf16.mxu0 0
        %473 = vmatpush2.bf16.msra.mxu0 0
        %474 = vmatprep.subr.bf16.mxu0 0
        %475 = vmatpush2.bf16.msra.mxu0 0
        %476 = vmatprep.subr.bf16.mxu0 0
        %477 = vmatpush2.bf16.msra.mxu0 0
        %478 = vmatprep.subr.bf16.mxu0 0
        %479 = vmatpush2.bf16.msra.mxu0 0
        %480 = vmatprep.subr.bf16.mxu0 0
        %481 = vmatpush2.bf16.msra.mxu0 0
        %482 = vmatprep.mubr.bf16.mxu0 0
        %483 = vmatmul.mubr.bf16.gmra.mxu0 %v448
        %v484 = vpop.f32.mrf.mxu0
        %v485 = vadd.f32 %v372, %v484
        %v486 = vpop.f32.mrf.mxu0
        %v487 = vpop.f32.mrf.mxu0
        %v488 = vpop.f32.mrf.mxu0
        %489 = vdwg.mxu0
        %490 = vmax.xlane.f32.xlu0 %v485
        %v491 = vpop.xlane.xlu0 %490
        %v492 = vsub.f32 %v485, %v491
        %v493 = vmul.f32 %v492, 1.442695
        %v494 = vpow.pop %v493
        %495 = vadd.xlane.f32.xlu0 %v494
        %v496 = vpop.xlane.xlu0 %495
        %v497 = vrcp.pop %v496
        %v498 = vmul.f32 %v360, %v497
        %500 = vset.pattern.permute.xlu0 1
        %501 = vperm.xlu0 %500, %v498
        %v502 = vpop.permute.xlu0 %501
        %v504 = vmul.f32 %v502, %v494
        %v505 = vadd.f32 %v443, %v504
        %506 = vrot.lane.b32.xlu0 %v362, 64
        %v507 = vpop.permute.xlu0 %506
        %v509 = vsel %vm307, %v507, 0
        %511 = vmatprep.subr.bf16.mxu0 0
        %512 = vmatpush1.bf16.msra.mxu0 0
        %513 = vmatprep.subr.bf16.mxu0 0
        %514 = vmatpush1.bf16.msra.mxu0 0
        %515 = vmatprep.subr.bf16.mxu0 0
        %516 = vmatpush1.bf16.msra.mxu0 0
        %517 = vmatprep.subr.bf16.mxu0 0
        %518 = vmatpush1.bf16.msra.mxu0 0
        %519 = vmatprep.subr.bf16.mxu0 0
        %520 = vmatpush1.bf16.msra.mxu0 0
        %521 = vmatprep.subr.bf16.mxu0 0
        %522 = vmatpush1.bf16.msra.mxu0 0
        %523 = vmatprep.subr.bf16.mxu0 0
        %524 = vmatpush1.bf16.msra.mxu0 %v383
        %525 = vmatprep.subr.bf16.mxu0 0
        %526 = vmatpush1.bf16.msra.mxu0 %v382
        %527 = vmatprep.subr.bf16.mxu0 0
        %528 = vmatpush2.bf16.msra.mxu0 0
        %529 = vmatprep.subr.bf16.mxu0 0
        %530 = vmatpush2.bf16.msra.mxu0 0
        %531 = vmatprep.subr.bf16.mxu0 0
        %532 = vmatpush2.bf16.msra.mxu0 0
        %533 = vmatprep.subr.bf16.mxu0 0
        %534 = vmatpush2.bf16.msra.mxu0 0
        %535 = vmatprep.subr.bf16.mxu0 0
        %536 = vmatpush2.bf16.msra.mxu0 0
        %537 = vmatprep.subr.bf16.mxu0 0
        %538 = vmatpush2.bf16.msra.mxu0 0
        %539 = vmatprep.subr.bf16.mxu0 0
        %540 = vmatpush2.bf16.msra.mxu0 0
        %541 = vmatprep.subr.bf16.mxu0 0
        %542 = vmatpush2.bf16.msra.mxu0 0
        %543 = vmatprep.mubr.bf16.mxu0 0
        %544 = vmatmul.mubr.bf16.gmra.mxu0 %v509
        %v545 = vpop.f32.mrf.mxu0
        %v546 = vadd.f32 %v372, %v545
        %v547 = vpop.f32.mrf.mxu0
        %v548 = vpop.f32.mrf.mxu0
        %v549 = vpop.f32.mrf.mxu0
        %550 = vdwg.mxu0
        %551 = vmax.xlane.f32.xlu0 %v546
        %v552 = vpop.xlane.xlu0 %551
        %v553 = vsub.f32 %v546, %v552
        %v554 = vmul.f32 %v553, 1.442695
        %v555 = vpow.pop %v554
        %556 = vadd.xlane.f32.xlu0 %v555
        %v557 = vpop.xlane.xlu0 %556
        %v558 = vrcp.pop %v557
        %v559 = vmul.f32 %v360, %v558
        %561 = vset.pattern.permute.xlu0 2
        %562 = vperm.xlu0 %561, %v559
        %v563 = vpop.permute.xlu0 %562
        %v565 = vmul.f32 %v563, %v555
        %v566 = vadd.f32 %v505, %v565
        %567 = vrot.lane.b32.xlu0 %v362, 32
        %v568 = vpop.permute.xlu0 %567
        %v570 = vsel %vm307, %v568, 0
        %572 = vmatprep.subr.bf16.mxu0 0
        %573 = vmatpush1.bf16.msra.mxu0 0
        %574 = vmatprep.subr.bf16.mxu0 0
        %575 = vmatpush1.bf16.msra.mxu0 0
        %576 = vmatprep.subr.bf16.mxu0 0
        %577 = vmatpush1.bf16.msra.mxu0 0
        %578 = vmatprep.subr.bf16.mxu0 0
        %579 = vmatpush1.bf16.msra.mxu0 0
        %580 = vmatprep.subr.bf16.mxu0 0
        %581 = vmatpush1.bf16.msra.mxu0 0
        %582 = vmatprep.subr.bf16.mxu0 0
        %583 = vmatpush1.bf16.msra.mxu0 0
        %584 = vmatprep.subr.bf16.mxu0 0
        %585 = vmatpush1.bf16.msra.mxu0 %v383
        %586 = vmatprep.subr.bf16.mxu0 0
        %587 = vmatpush1.bf16.msra.mxu0 %v382
        %588 = vmatprep.subr.bf16.mxu0 0
        %589 = vmatpush2.bf16.msra.mxu0 0
        %590 = vmatprep.subr.bf16.mxu0 0
        %591 = vmatpush2.bf16.msra.mxu0 0
        %592 = vmatprep.subr.bf16.mxu0 0
        %593 = vmatpush2.bf16.msra.mxu0 0
        %594 = vmatprep.subr.bf16.mxu0 0
        %595 = vmatpush2.bf16.msra.mxu0 0
        %596 = vmatprep.subr.bf16.mxu0 0
        %597 = vmatpush2.bf16.msra.mxu0 0
        %598 = vmatprep.subr.bf16.mxu0 0
        %599 = vmatpush2.bf16.msra.mxu0 0
        %600 = vmatprep.subr.bf16.mxu0 0
        %601 = vmatpush2.bf16.msra.mxu0 0
        %602 = vmatprep.subr.bf16.mxu0 0
        %603 = vmatpush2.bf16.msra.mxu0 0
        %604 = vmatprep.mubr.bf16.mxu0 0
        %605 = vmatmul.mubr.bf16.gmra.mxu0 %v570
        %v606 = vpop.f32.mrf.mxu0
        %v607 = vadd.f32 %v372, %v606
        %v608 = vpop.f32.mrf.mxu0
        %v609 = vpop.f32.mrf.mxu0
        %v610 = vpop.f32.mrf.mxu0
        %611 = vdwg.mxu0
        %612 = vmax.xlane.f32.xlu0 %v607
        %v613 = vpop.xlane.xlu0 %612
        %v614 = vsub.f32 %v607, %v613
        %v615 = vmul.f32 %v614, 1.442695
        %v616 = vpow.pop %v615
        %617 = vadd.xlane.f32.xlu0 %v616
        %v618 = vpop.xlane.xlu0 %617
        %v619 = vrcp.pop %v618
        %v620 = vmul.f32 %v360, %v619
        %622 = vset.pattern.permute.xlu0 3
        %623 = vperm.xlu0 %622, %v620
        %v624 = vpop.permute.xlu0 %623
        %v626 = vmul.f32 %v624, %v616
        %v627 = vadd.f32 %v566, %v626
        %628 = vst [vmem:[%s268] sm:$0xff] %v627
        %s629 = sand.u32 %s141, 1
        %s630 = scalar_lea.sflag [#allocation4], %s629
        %s631 = sand.u32 %s141, 1
        %s632 = smul.addr %s631, 8
        %s633 = scalar_lea.vmem [#allocation8], %s632
        // Predicated region
        $region53: #{tpu_custom_call.1} parent=39 // pred_check
          %p634 = pneg %p151
        $region54: #{tpu_custom_call.1} parent=39 // pred_check_branch
          %636 = sbr.rel (%p634) target = $region56
        $region55: #{tpu_custom_call.1} parent=39 // pred_region
          %s638 = ssub.s32 128, 128
          %639 = vsyncadd %s630, %s638
          %s640 = smul.addr %s23, 128
          %s641 = scalar_lea.hbm %s5, %s640
          %s643 = sshll.u32 %s633, 4
          %s644 = int_to_ptr.vmem [resolvable:$true] %s643
          %646 = dma.vmem_to_hbm [thread:$0]  %s644, 128, %s641, %s630
        $region56: #{tpu_custom_call.1} parent=39 // pred_fallthru
          _
      $region40: #{tpu_custom_call.1} parent=5 // pred_fallthru
        _
      %p647 = scmp.le.s32.totalorder 2, %s18
      // Predicated region
      $region57: #{tpu_custom_call.1} parent=5 // pred_check
        %p648 = pneg %p647
      $region58: #{tpu_custom_call.1} parent=5 // pred_check_branch
        %650 = sbr.rel (%p648) target = $region60
      $region59: #{tpu_custom_call.1} parent=5 // pred_region
        %s651 = ssub.s32 %s18, 2
        // Predicated region
        $region61: #{tpu_custom_call.1} parent=59 // pred_check
          %p652 = pneg %p157
        $region62: #{tpu_custom_call.1} parent=59 // pred_check_branch
          %654 = sbr.rel (%p652) target = $region64
        $region63: #{tpu_custom_call.1} parent=59 // pred_region
          %s655 = sand.u32 %s142, 1
          %s656 = scalar_lea.sflag [#allocation4], %s655
          %s657 = sand.u32 %s142, 1
          %s658 = smul.addr %s657, 8
          %s659 = scalar_lea.vmem [#allocation8], %s658
          %660 = dma.done %s656, 128
        $region64: #{tpu_custom_call.1} parent=59 // pred_fallthru
          _
      $region60: #{tpu_custom_call.1} parent=5 // pred_fallthru
        _
    $region6: #{tpu_custom_call.1} parent=1 // loop_footer
      %s22 = sadd.s32 1, %s18
    $region7: #{tpu_custom_call.1} parent=1 // loop_footer_branch
      %17 = sbr.rel target = $region3
    $region8: #{tpu_custom_call.1} parent=1 // loop_exit
      _
    %661 = vsyncpa [#allocation3], 1
    %s662 = scalar_lea.sflag [#allocation3], 1
    %663 = vsyncpa %s662, 1
    %664 = vsyncpa [#allocation6], 1
    %665 = vsyncpa [#allocation4], 1
    %s666 = scalar_lea.sflag [#allocation4], 1
    %667 = vsyncpa %s666, 1

</llo_original>
